<compile_context>
chip_gen: v6e
topology: v6e:2x2x1
jax: 0.10.0
libtpu: 0.0.40
codegen_flags: <defaults>
</compile_context>

<pallas_src>
import functools

import jax
import jax.numpy as jnp
from jax.experimental import pallas as pl
from jax.experimental.pallas import tpu as pltpu

LEAKY_SLOPE = 0.01  # nn.LeakyReLU() default negative_slope


# ----------------------------- Pallas kernels ------------------------------ #
def _conv_kernel(x_ref, w_ref, b_ref, o_ref, *, stride, apply_act, slope):
    # x_ref : (H_pad, Cin)   one (batch, width) column, zero-padded along time
    # w_ref : (K, Cin, Cout) bf16 (MXU path) or f32 (Cin==1 FIR path)
    # b_ref : (1, Cout)      f32
    # o_ref : (H_out, Cout)  f32
    h_out, cout = o_ref.shape
    cin = x_ref.shape[-1]
    taps = w_ref.shape[0]

    acc = jnp.zeros((h_out, cout), jnp.float32)
    for k in range(taps):                      # unrolled at trace time
        if stride == 1:
            xk = x_ref[pl.ds(k, h_out), :]                     # shifted read
        else:
            xk = x_ref[pl.ds(k, h_out, stride=stride), :]      # strided read
        if cin == 1:
            # First layer (Cin=1): VPU FIR via broadcast outer product, f32.
            acc = acc + xk * w_ref[k]
        else:
            acc = acc + jnp.dot(xk.astype(jnp.bfloat16), w_ref[k],
                                preferred_element_type=jnp.float32)
    acc = acc + b_ref[...]
    if apply_act:
        acc = jnp.where(acc > 0.0, acc, slope * acc)           # LeakyReLU
    o_ref[...] = acc.astype(o_ref.dtype)


def _mid_out_kernel(x_ref, wm_ref, bm_ref, wo_ref, bo_ref, o_ref, m_ref, *,
                    slope):
    # Fused mid_conv (+LeakyReLU) and output_conv; mid result never hits HBM.
    # x_ref : (H + 2*pm, C)       padded input column
    # wm_ref: (Km, C, C) bf16     ; bm_ref: (1, C) f32
    # wo_ref: (Ko, C, 1) f32      ; bo_ref: (1, 1) f32
    # o_ref : (H, 1) f32
    # m_ref : (H + Ko - 1, C) f32 VMEM scratch (mid activation + zero halo)
    h = o_ref.shape[0]
    c = wm_ref.shape[-1]
    km, ko = wm_ref.shape[0], wo_ref.shape[0]
    po = (ko - 1) // 2

    # ---- mid conv: K accumulated bf16 matmuls, f32 accumulate ----
    acc = jnp.zeros((h, c), jnp.float32)
    for k in range(km):
        xk = x_ref[pl.ds(k, h), :].astype(jnp.bfloat16)
        acc = acc + jnp.dot(xk, wm_ref[k], preferred_element_type=jnp.float32)
    acc = acc + bm_ref[...]
    acc = jnp.where(acc > 0.0, acc, slope * acc)

    # Stage the mid activation with zero halo rows, entirely in VMEM.
    m_ref[pl.ds(0, po), :] = jnp.zeros((po, c), jnp.float32)
    m_ref[pl.ds(po + h, po), :] = jnp.zeros((po, c), jnp.float32)
    m_ref[pl.ds(po, h), :] = acc

    # ---- output conv (tiny, Cout=1): keep f32 for precision ----
    acc2 = jnp.zeros((h, o_ref.shape[1]), jnp.float32)
    for k in range(ko):
        acc2 = acc2 + jnp.dot(m_ref[pl.ds(k, h), :], wo_ref[k],
                              preferred_element_type=jnp.float32)
    acc2 = acc2 + bo_ref[...]
    o_ref[...] = acc2.astype(o_ref.dtype)


# ------------------------------ layer wrappers ------------------------------ #
def conv_kx1(a, weight, bias, *, stride, padding, apply_act, slope=LEAKY_SLOPE):
    """(K,1) Conv2d + bias (+LeakyReLU) in the internal (N, H, C) layout."""
    N, H, Cin = a.shape
    Cout, Cin_w, K, KW = weight.shape
    assert Cin == Cin_w and KW == 1
    H_out = (H + 2 * padding - K) // stride + 1
    Hp = H + 2 * padding
    x_pad = jnp.pad(a, ((0, 0), (padding, padding), (0, 0)))

    # (Cout, Cin, K, 1) -> (K, Cin, Cout); bf16 for MXU path, f32 for FIR path.
    w_dt = jnp.float32 if Cin == 1 else jnp.bfloat16
    w_t = jnp.transpose(weight[..., 0], (2, 1, 0)).astype(w_dt)
    b2 = bias.reshape(1, Cout).astype(jnp.float32)

    kernel = functools.partial(_conv_kernel, stride=stride,
                               apply_act=apply_act, slope=slope)
    return pl.pallas_call(
        kernel,
        out_shape=jax.ShapeDtypeStruct((N, H_out, Cout), jnp.float32),
        grid=(N,),
        in_specs=[
            pl.BlockSpec((None, Hp, Cin), lambda n: (n, 0, 0)),
            pl.BlockSpec((K, Cin, Cout), lambda n: (0, 0, 0)),   # resident
            pl.BlockSpec((1, Cout), lambda n: (0, 0)),
        ],
        out_specs=pl.BlockSpec((None, H_out, Cout), lambda n: (n, 0, 0)),
        compiler_params=pltpu.CompilerParams(dimension_semantics=("parallel",)),
    )(x_pad, w_t, b2)


def fused_mid_out(a, wm, bm, wo, bo, *, slope=LEAKY_SLOPE):
    """mid_conv + LeakyReLU + output_conv fused into one pallas_call."""
    N, H, C = a.shape
    Cm, Cin_m, Km, _ = wm.shape
    Co, Cin_o, Ko, _ = wo.shape
    assert Cin_m == C and Cm == C and Cin_o == C and Co == 1
    pm, po = (Km - 1) // 2, (Ko - 1) // 2
    x_pad = jnp.pad(a, ((0, 0), (pm, pm), (0, 0)))

    wm_t = jnp.transpose(wm[..., 0], (2, 1, 0)).astype(jnp.bfloat16)  # (Km,C,C)
    wo_t = jnp.transpose(wo[..., 0], (2, 1, 0)).astype(jnp.float32)   # (Ko,C,1)
    bm2 = bm.reshape(1, Cm).astype(jnp.float32)
    bo2 = bo.reshape(1, Co).astype(jnp.float32)

    kernel = functools.partial(_mid_out_kernel, slope=slope)
    return pl.pallas_call(
        kernel,
        out_shape=jax.ShapeDtypeStruct((N, H, Co), jnp.float32),
        grid=(N,),
        in_specs=[
            pl.BlockSpec((None, H + 2 * pm, C), lambda n: (n, 0, 0)),
            pl.BlockSpec((Km, C, Cm), lambda n: (0, 0, 0)),
            pl.BlockSpec((1, Cm), lambda n: (0, 0)),
            pl.BlockSpec((Ko, C, Co), lambda n: (0, 0, 0)),
            pl.BlockSpec((1, Co), lambda n: (0, 0)),
        ],
        out_specs=pl.BlockSpec((None, H, Co), lambda n: (n, 0, 0)),
        scratch_shapes=[pltpu.VMEM((H + 2 * po, C), jnp.float32)],
        compiler_params=pltpu.CompilerParams(dimension_semantics=("parallel",)),
    )(x_pad, wm_t, bm2, wo_t, bo2)


# ------------------------- module forward (Pallas) ------------------------- #
def init_params(key, repeats):
    """Deterministic synthetic parameters. weight_norm at init reproduces the
    underlying weight, so these stand for the effective (normalized) weights."""
    params = {"convs": [], "mid": None, "out": None}
    for i in range(repeats):
        cin = 2 ** (i if i == 0 else i + 4)
        cout = 2 ** (i + 5)
        key, kw, kb = jax.random.split(key, 3)
        w = 0.1 * jax.random.normal(kw, (cout, cin, 5, 1), jnp.float32)
        b = 0.1 * jax.random.normal(kb, (cout,), jnp.float32)
        params["convs"].append((w, b))
    c = 2 ** (repeats + 4)
    key, kw, kb = jax.random.split(key, 3)
    params["mid"] = (0.1 * jax.random.normal(kw, (c, c, 5, 1), jnp.float32),
                     0.1 * jax.random.normal(kb, (c,), jnp.float32))
    key, kw, kb = jax.random.split(key, 3)
    params["out"] = (0.1 * jax.random.normal(kw, (1, c, 3, 1), jnp.float32),
                     0.1 * jax.random.normal(kb, (1,), jnp.float32))
    return params


def sub_discriminator_mpd_forward(x, params, *, period, repeats):
    # TODO(synk): weight_norm/spectral_norm reparametrization is a training-time
    # construct; effective weights are used directly here.
    B, T = x.shape
    if T % period != 0:
        x = jnp.pad(x, ((0, 0), (0, period - T % period)))
        T = x.shape[1]
    H, W = T // period, period
    # NCHW (B, 1, H, W) -> internal (N = B*W, H, C=1): time on sublanes.
    a = x.reshape(B, H, W).transpose(0, 2, 1).reshape(B * W, H, 1)

    hidden_features = []
    for i in range(repeats):
        w, b = params["convs"][i]
        a = conv_kx1(a, w, b, stride=3, padding=2, apply_act=True)
        Hh, Cc = a.shape[1], a.shape[2]
        # hidden feature returned in PyTorch NCHW layout (B, C, H, W)
        hidden_features.append(a.reshape(B, W, Hh, Cc).transpose(0, 3, 2, 1))

    wm, bm = params["mid"]
    wo, bo = params["out"]
    out = fused_mid_out(a, wm, bm, wo, bo)              # (N, H, 1)
    Hf = out.shape[1]
    out = out.reshape(B, W, Hf).transpose(0, 2, 1).reshape(B, Hf * W)
    return out, hidden_features


# ------------------------- pure-JAX reference ------------------------------ #
def _conv_ref(x, w, b, stride, padding):
    out = jax.lax.conv_general_dilated(
        x, w, window_strides=(stride, 1),
        padding=((padding, padding), (0, 0)),
        dimension_numbers=("NCHW", "OIHW", "NCHW"))
    return out + b.reshape(1, -1, 1, 1)


def reference_forward(x, params, *, period, repeats):
    B, T = x.shape
    if T % period != 0:
        x = jnp.pad(x, ((0, 0), (0, period - T % period)))
        B, T = x.shape
    x = x.reshape(B, 1, T // period, period)
    hidden = []
    leaky = lambda v: jnp.where(v > 0, v, LEAKY_SLOPE * v)
    for i in range(repeats):
        w, b = params["convs"][i]
        x = leaky(_conv_ref(x, w, b, 3, 2))
        hidden.append(x)
    w, b = params["mid"]
    x = leaky(_conv_ref(x, w, b, 1, 2))
    w, b = params["out"]
    x = _conv_ref(x, w, b, 1, 1)
    return x.reshape(B, -1), hidden


# --------------------------------- main ------------------------------------ #
if __name__ == "__main__":
    period = 4
    repeats = 2
    B, T = 2, 94  # T % period != 0 -> exercises the zero-pad branch (pads to 96)

    key = jax.random.PRNGKey(0)
    key, kx = jax.random.split(key)
    x = jax.random.normal(kx, (B, T), jnp.float32)
    params = init_params(key, repeats)

    fwd = jax.jit(functools.partial(sub_discriminator_mpd_forward,
                                    period=period, repeats=repeats))
    out, hidden = fwd(x, params)
    out = jax.block_until_ready(out)
    hidden = [jax.block_until_ready(h) for h in hidden]

    ref_out, ref_hidden = reference_forward(x, params, period=period,
                                            repeats=repeats)
    # bf16 MXU operands (f32 accumulation) -> relaxed tolerance vs f32 reference.
    assert out.shape == ref_out.shape
    assert jnp.allclose(out, ref_out, atol=3e-2, rtol=3e-2)
    for h, rh in zip(hidden, ref_hidden):
        assert h.shape == rh.shape
        assert jnp.allclose(h, rh, atol=3e-2, rtol=3e-2)

    print("KERNEL_OK")
</pallas_src>

<mosaic_0001>
module attributes {stable_mosaic.version = 11 : i64} {
  func.func @_conv_kernel(%arg0: i32, %arg1: memref<1x28x1xf32, #tpu.memory_space<vmem>>, %arg2: memref<5x1x32xf32, #tpu.memory_space<vmem>>, %arg3: memref<1x32xf32, #tpu.memory_space<vmem>>, %arg4: memref<1x8x32xf32, #tpu.memory_space<vmem>>) attributes {dimension_semantics = [#tpu.dimension_semantics<parallel>], iteration_bounds = array<i64: 8>, scalar_prefetch = 0 : i64, scratch_operands = 0 : i64, tpu.core_type = #tpu.core_type<tc>, window_params = [{transform_indices = @transform_0, window_bounds = array<i64: 1, 28, 1>}, {pipeline_mode = #tpu.pipeline_mode<synchronous>, transform_indices = @transform_1, window_bounds = array<i64: 5, 1, 32>}, {pipeline_mode = #tpu.pipeline_mode<synchronous>, transform_indices = @transform_2, window_bounds = array<i64: 1, 32>}, {transform_indices = @transform_3, window_bounds = array<i64: 1, 8, 32>}]} {
    %cst = arith.constant 0.000000e+00 : f32
    %0 = vector.broadcast %cst : f32 to vector<8x32xf32>
    %c0 = arith.constant 0 : index
    %c0_0 = arith.constant 0 : index
    %c0_1 = arith.constant 0 : index
    %1 = tpu.strided_load %arg1[%c0, %c0_0, %c0_1] {strides = array<i32: 1, 3, 1>} : memref<1x28x1xf32, #tpu.memory_space<vmem>>, vector<1x8x1xf32>
    %2 = vector.shape_cast %1 : vector<1x8x1xf32> to vector<8x1xf32>
    %c0_2 = arith.constant 0 : index
    %c0_3 = arith.constant 0 : index
    %c0_4 = arith.constant 0 : index
    %3 = vector.load %arg2[%c0_2, %c0_3, %c0_4] : memref<5x1x32xf32, #tpu.memory_space<vmem>>, vector<1x1x32xf32>
    %4 = vector.shape_cast %3 : vector<1x1x32xf32> to vector<1x32xf32>
    %5 = vector.broadcast %2 : vector<8x1xf32> to vector<8x32xf32>
    %6 = vector.broadcast %4 : vector<1x32xf32> to vector<8x32xf32>
    %7 = arith.mulf %5, %6 : vector<8x32xf32>
    %8 = arith.addf %0, %7 : vector<8x32xf32>
    %c0_5 = arith.constant 0 : index
    %c1 = arith.constant 1 : index
    %c0_6 = arith.constant 0 : index
    %9 = tpu.strided_load %arg1[%c0_5, %c1, %c0_6] {strides = array<i32: 1, 3, 1>} : memref<1x28x1xf32, #tpu.memory_space<vmem>>, vector<1x8x1xf32>
    %10 = vector.shape_cast %9 : vector<1x8x1xf32> to vector<8x1xf32>
    %c1_7 = arith.constant 1 : index
    %c0_8 = arith.constant 0 : index
    %c0_9 = arith.constant 0 : index
    %11 = vector.load %arg2[%c1_7, %c0_8, %c0_9] : memref<5x1x32xf32, #tpu.memory_space<vmem>>, vector<1x1x32xf32>
    %12 = vector.shape_cast %11 : vector<1x1x32xf32> to vector<1x32xf32>
    %13 = vector.broadcast %10 : vector<8x1xf32> to vector<8x32xf32>
    %14 = vector.broadcast %12 : vector<1x32xf32> to vector<8x32xf32>
    %15 = arith.mulf %13, %14 : vector<8x32xf32>
    %16 = arith.addf %8, %15 : vector<8x32xf32>
    %c0_10 = arith.constant 0 : index
    %c2 = arith.constant 2 : index
    %c0_11 = arith.constant 0 : index
    %17 = tpu.strided_load %arg1[%c0_10, %c2, %c0_11] {strides = array<i32: 1, 3, 1>} : memref<1x28x1xf32, #tpu.memory_space<vmem>>, vector<1x8x1xf32>
    %18 = vector.shape_cast %17 : vector<1x8x1xf32> to vector<8x1xf32>
    %c2_12 = arith.constant 2 : index
    %c0_13 = arith.constant 0 : index
    %c0_14 = arith.constant 0 : index
    %19 = vector.load %arg2[%c2_12, %c0_13, %c0_14] : memref<5x1x32xf32, #tpu.memory_space<vmem>>, vector<1x1x32xf32>
    %20 = vector.shape_cast %19 : vector<1x1x32xf32> to vector<1x32xf32>
    %21 = vector.broadcast %18 : vector<8x1xf32> to vector<8x32xf32>
    %22 = vector.broadcast %20 : vector<1x32xf32> to vector<8x32xf32>
    %23 = arith.mulf %21, %22 : vector<8x32xf32>
    %24 = arith.addf %16, %23 : vector<8x32xf32>
    %c0_15 = arith.constant 0 : index
    %c3 = arith.constant 3 : index
    %c0_16 = arith.constant 0 : index
    %25 = tpu.strided_load %arg1[%c0_15, %c3, %c0_16] {strides = array<i32: 1, 3, 1>} : memref<1x28x1xf32, #tpu.memory_space<vmem>>, vector<1x8x1xf32>
    %26 = vector.shape_cast %25 : vector<1x8x1xf32> to vector<8x1xf32>
    %c3_17 = arith.constant 3 : index
    %c0_18 = arith.constant 0 : index
    %c0_19 = arith.constant 0 : index
    %27 = vector.load %arg2[%c3_17, %c0_18, %c0_19] : memref<5x1x32xf32, #tpu.memory_space<vmem>>, vector<1x1x32xf32>
    %28 = vector.shape_cast %27 : vector<1x1x32xf32> to vector<1x32xf32>
    %29 = vector.broadcast %26 : vector<8x1xf32> to vector<8x32xf32>
    %30 = vector.broadcast %28 : vector<1x32xf32> to vector<8x32xf32>
    %31 = arith.mulf %29, %30 : vector<8x32xf32>
    %32 = arith.addf %24, %31 : vector<8x32xf32>
    %c0_20 = arith.constant 0 : index
    %c4 = arith.constant 4 : index
    %c0_21 = arith.constant 0 : index
    %33 = tpu.strided_load %arg1[%c0_20, %c4, %c0_21] {strides = array<i32: 1, 3, 1>} : memref<1x28x1xf32, #tpu.memory_space<vmem>>, vector<1x8x1xf32>
    %34 = vector.shape_cast %33 : vector<1x8x1xf32> to vector<8x1xf32>
    %c4_22 = arith.constant 4 : index
    %c0_23 = arith.constant 0 : index
    %c0_24 = arith.constant 0 : index
    %35 = vector.load %arg2[%c4_22, %c0_23, %c0_24] : memref<5x1x32xf32, #tpu.memory_space<vmem>>, vector<1x1x32xf32>
    %36 = vector.shape_cast %35 : vector<1x1x32xf32> to vector<1x32xf32>
    %37 = vector.broadcast %34 : vector<8x1xf32> to vector<8x32xf32>
    %38 = vector.broadcast %36 : vector<1x32xf32> to vector<8x32xf32>
    %39 = arith.mulf %37, %38 : vector<8x32xf32>
    %40 = arith.addf %32, %39 : vector<8x32xf32>
    %c0_25 = arith.constant 0 : index
    %c0_26 = arith.constant 0 : index
    %41 = vector.load %arg3[%c0_25, %c0_26] : memref<1x32xf32, #tpu.memory_space<vmem>>, vector<1x32xf32>
    %42 = vector.broadcast %41 : vector<1x32xf32> to vector<8x32xf32>
    %43 = arith.addf %40, %42 : vector<8x32xf32>
    %cst_27 = arith.constant 0.000000e+00 : f32
    %44 = vector.broadcast %cst_27 : f32 to vector<8x32xf32>
    %45 = arith.cmpf ogt, %43, %44 : vector<8x32xf32>
    %cst_28 = arith.constant 0.00999999977 : f32
    %46 = vector.broadcast %cst_28 : f32 to vector<8x32xf32>
    %47 = arith.mulf %46, %43 : vector<8x32xf32>
    %48 = arith.select %45, %43, %47 : vector<8x32xi1>, vector<8x32xf32>
    %c0_29 = arith.constant 0 : index
    %c0_30 = arith.constant 0 : index
    %c0_31 = arith.constant 0 : index
    %49 = vector.load %arg4[%c0_29, %c0_30, %c0_31] : memref<1x8x32xf32, #tpu.memory_space<vmem>>, vector<1x8x32xf32>
    %50 = vector.shape_cast %49 : vector<1x8x32xf32> to vector<8x32xf32>
    %51 = vector.shape_cast %48 : vector<8x32xf32> to vector<1x8x32xf32>
    tpu.vector_store %arg4[%c0_29, %c0_30, %c0_31], %51 {strides = array<i32>} : memref<1x8x32xf32, #tpu.memory_space<vmem>>, vector<1x8x32xf32>,
    return
  }
  func.func @transform_0(%arg0: i32) -> (i32, i32, i32) {
    %c0_i32 = arith.constant 0 : i32
    %c0_i32_0 = arith.constant 0 : i32
    %c0_i32_1 = arith.constant 0 : i32
    return %arg0, %c0_i32, %c0_i32_0 : i32, i32, i32
  }
  func.func @transform_1(%arg0: i32) -> (i32, i32, i32) {
    %c0_i32 = arith.constant 0 : i32
    %c0_i32_0 = arith.constant 0 : i32
    %c0_i32_1 = arith.constant 0 : i32
    %c0_i32_2 = arith.constant 0 : i32
    return %c0_i32, %c0_i32_0, %c0_i32_1 : i32, i32, i32
  }
  func.func @transform_2(%arg0: i32) -> (i32, i32) {
    %c0_i32 = arith.constant 0 : i32
    %c0_i32_0 = arith.constant 0 : i32
    %c0_i32_1 = arith.constant 0 : i32
    return %c0_i32, %c0_i32_0 : i32, i32
  }
  func.func @transform_3(%arg0: i32) -> (i32, i32, i32) {
    %c0_i32 = arith.constant 0 : i32
    %c0_i32_0 = arith.constant 0 : i32
    %c0_i32_1 = arith.constant 0 : i32
    return %arg0, %c0_i32, %c0_i32_0 : i32, i32, i32
  }
}

module attributes {stable_mosaic.version = 11 : i64} {
  func.func @_conv_kernel(%arg0: i32, %arg1: memref<1x12x32xf32, #tpu.memory_space<vmem>>, %arg2: memref<5x32x64xbf16, #tpu.memory_space<vmem>>, %arg3: memref<1x64xf32, #tpu.memory_space<vmem>>, %arg4: memref<1x3x64xf32, #tpu.memory_space<vmem>>) attributes {dimension_semantics = [#tpu.dimension_semantics<parallel>], iteration_bounds = array<i64: 8>, scalar_prefetch = 0 : i64, scratch_operands = 0 : i64, tpu.core_type = #tpu.core_type<tc>, window_params = [{transform_indices = @transform_0, window_bounds = array<i64: 1, 12, 32>}, {pipeline_mode = #tpu.pipeline_mode<synchronous>, transform_indices = @transform_1, window_bounds = array<i64: 5, 32, 64>}, {pipeline_mode = #tpu.pipeline_mode<synchronous>, transform_indices = @transform_2, window_bounds = array<i64: 1, 64>}, {transform_indices = @transform_3, window_bounds = array<i64: 1, 3, 64>}]} {
    %cst = arith.constant 0.000000e+00 : f32
    %0 = vector.broadcast %cst : f32 to vector<3x64xf32>
    %c0 = arith.constant 0 : index
    %c0_0 = arith.constant 0 : index
    %c0_1 = arith.constant 0 : index
    %1 = tpu.strided_load %arg1[%c0, %c0_0, %c0_1] {strides = array<i32: 1, 3, 1>} : memref<1x12x32xf32, #tpu.memory_space<vmem>>, vector<1x3x32xf32>
    %2 = vector.shape_cast %1 : vector<1x3x32xf32> to vector<3x32xf32>
    %3 = arith.truncf %2 : vector<3x32xf32> to vector<3x32xbf16>
    %c0_2 = arith.constant 0 : index
    %c0_3 = arith.constant 0 : index
    %c0_4 = arith.constant 0 : index
    %4 = vector.load %arg2[%c0_2, %c0_3, %c0_4] : memref<5x32x64xbf16, #tpu.memory_space<vmem>>, vector<1x32x64xbf16>
    %5 = vector.shape_cast %4 : vector<1x32x64xbf16> to vector<32x64xbf16>
    %cst_5 = arith.constant dense<0.000000e+00> : vector<3x64xf32>
    %6 = tpu.matmul %3, %5, %cst_5 {dimension_numbers = #tpu.dot_dimension_numbers<[1], [0], [0], [1], [0, 0, 1, 1], [], []>} : vector<3x32xbf16>, vector<32x64xbf16>, vector<3x64xf32> -> vector<3x64xf32>
    %7 = arith.addf %0, %6 : vector<3x64xf32>
    %c0_6 = arith.constant 0 : index
    %c1 = arith.constant 1 : index
    %c0_7 = arith.constant 0 : index
    %8 = tpu.strided_load %arg1[%c0_6, %c1, %c0_7] {strides = array<i32: 1, 3, 1>} : memref<1x12x32xf32, #tpu.memory_space<vmem>>, vector<1x3x32xf32>
    %9 = vector.shape_cast %8 : vector<1x3x32xf32> to vector<3x32xf32>
    %10 = arith.truncf %9 : vector<3x32xf32> to vector<3x32xbf16>
    %c1_8 = arith.constant 1 : index
    %c0_9 = arith.constant 0 : index
    %c0_10 = arith.constant 0 : index
    %11 = vector.load %arg2[%c1_8, %c0_9, %c0_10] : memref<5x32x64xbf16, #tpu.memory_space<vmem>>, vector<1x32x64xbf16>
    %12 = vector.shape_cast %11 : vector<1x32x64xbf16> to vector<32x64xbf16>
    %cst_11 = arith.constant dense<0.000000e+00> : vector<3x64xf32>
    %13 = tpu.matmul %10, %12, %cst_11 {dimension_numbers = #tpu.dot_dimension_numbers<[1], [0], [0], [1], [0, 0, 1, 1], [], []>} : vector<3x32xbf16>, vector<32x64xbf16>, vector<3x64xf32> -> vector<3x64xf32>
    %14 = arith.addf %7, %13 : vector<3x64xf32>
    %c0_12 = arith.constant 0 : index
    %c2 = arith.constant 2 : index
    %c0_13 = arith.constant 0 : index
    %15 = tpu.strided_load %arg1[%c0_12, %c2, %c0_13] {strides = array<i32: 1, 3, 1>} : memref<1x12x32xf32, #tpu.memory_space<vmem>>, vector<1x3x32xf32>
    %16 = vector.shape_cast %15 : vector<1x3x32xf32> to vector<3x32xf32>
    %17 = arith.truncf %16 : vector<3x32xf32> to vector<3x32xbf16>
    %c2_14 = arith.constant 2 : index
    %c0_15 = arith.constant 0 : index
    %c0_16 = arith.constant 0 : index
    %18 = vector.load %arg2[%c2_14, %c0_15, %c0_16] : memref<5x32x64xbf16, #tpu.memory_space<vmem>>, vector<1x32x64xbf16>
    %19 = vector.shape_cast %18 : vector<1x32x64xbf16> to vector<32x64xbf16>
    %cst_17 = arith.constant dense<0.000000e+00> : vector<3x64xf32>
    %20 = tpu.matmul %17, %19, %cst_17 {dimension_numbers = #tpu.dot_dimension_numbers<[1], [0], [0], [1], [0, 0, 1, 1], [], []>} : vector<3x32xbf16>, vector<32x64xbf16>, vector<3x64xf32> -> vector<3x64xf32>
    %21 = arith.addf %14, %20 : vector<3x64xf32>
    %c0_18 = arith.constant 0 : index
    %c3 = arith.constant 3 : index
    %c0_19 = arith.constant 0 : index
    %22 = tpu.strided_load %arg1[%c0_18, %c3, %c0_19] {strides = array<i32: 1, 3, 1>} : memref<1x12x32xf32, #tpu.memory_space<vmem>>, vector<1x3x32xf32>
    %23 = vector.shape_cast %22 : vector<1x3x32xf32> to vector<3x32xf32>
    %24 = arith.truncf %23 : vector<3x32xf32> to vector<3x32xbf16>
    %c3_20 = arith.constant 3 : index
    %c0_21 = arith.constant 0 : index
    %c0_22 = arith.constant 0 : index
    %25 = vector.load %arg2[%c3_20, %c0_21, %c0_22] : memref<5x32x64xbf16, #tpu.memory_space<vmem>>, vector<1x32x64xbf16>
    %26 = vector.shape_cast %25 : vector<1x32x64xbf16> to vector<32x64xbf16>
    %cst_23 = arith.constant dense<0.000000e+00> : vector<3x64xf32>
    %27 = tpu.matmul %24, %26, %cst_23 {dimension_numbers = #tpu.dot_dimension_numbers<[1], [0], [0], [1], [0, 0, 1, 1], [], []>} : vector<3x32xbf16>, vector<32x64xbf16>, vector<3x64xf32> -> vector<3x64xf32>
    %28 = arith.addf %21, %27 : vector<3x64xf32>
    %c0_24 = arith.constant 0 : index
    %c4 = arith.constant 4 : index
    %c0_25 = arith.constant 0 : index
    %29 = tpu.strided_load %arg1[%c0_24, %c4, %c0_25] {strides = array<i32: 1, 3, 1>} : memref<1x12x32xf32, #tpu.memory_space<vmem>>, vector<1x3x32xf32>
    %30 = vector.shape_cast %29 : vector<1x3x32xf32> to vector<3x32xf32>
    %31 = arith.truncf %30 : vector<3x32xf32> to vector<3x32xbf16>
    %c4_26 = arith.constant 4 : index
    %c0_27 = arith.constant 0 : index
    %c0_28 = arith.constant 0 : index
    %32 = vector.load %arg2[%c4_26, %c0_27, %c0_28] : memref<5x32x64xbf16, #tpu.memory_space<vmem>>, vector<1x32x64xbf16>
    %33 = vector.shape_cast %32 : vector<1x32x64xbf16> to vector<32x64xbf16>
    %cst_29 = arith.constant dense<0.000000e+00> : vector<3x64xf32>
    %34 = tpu.matmul %31, %33, %cst_29 {dimension_numbers = #tpu.dot_dimension_numbers<[1], [0], [0], [1], [0, 0, 1, 1], [], []>} : vector<3x32xbf16>, vector<32x64xbf16>, vector<3x64xf32> -> vector<3x64xf32>
    %35 = arith.addf %28, %34 : vector<3x64xf32>
    %c0_30 = arith.constant 0 : index
    %c0_31 = arith.constant 0 : index
    %36 = vector.load %arg3[%c0_30, %c0_31] : memref<1x64xf32, #tpu.memory_space<vmem>>, vector<1x64xf32>
    %37 = vector.broadcast %36 : vector<1x64xf32> to vector<3x64xf32>
    %38 = arith.addf %35, %37 : vector<3x64xf32>
    %cst_32 = arith.constant 0.000000e+00 : f32
    %39 = vector.broadcast %cst_32 : f32 to vector<3x64xf32>
    %40 = arith.cmpf ogt, %38, %39 : vector<3x64xf32>
    %cst_33 = arith.constant 0.00999999977 : f32
    %41 = vector.broadcast %cst_33 : f32 to vector<3x64xf32>
    %42 = arith.mulf %41, %38 : vector<3x64xf32>
    %43 = arith.select %40, %38, %42 : vector<3x64xi1>, vector<3x64xf32>
    %c0_34 = arith.constant 0 : index
    %c0_35 = arith.constant 0 : index
    %c0_36 = arith.constant 0 : index
    %44 = vector.load %arg4[%c0_34, %c0_35, %c0_36] : memref<1x3x64xf32, #tpu.memory_space<vmem>>, vector<1x3x64xf32>
    %45 = vector.shape_cast %44 : vector<1x3x64xf32> to vector<3x64xf32>
    %46 = vector.shape_cast %43 : vector<3x64xf32> to vector<1x3x64xf32>
    tpu.vector_store %arg4[%c0_34, %c0_35, %c0_36], %46 {strides = array<i32>} : memref<1x3x64xf32, #tpu.memory_space<vmem>>, vector<1x3x64xf32>,
    return
  }
  func.func @transform_0(%arg0: i32) -> (i32, i32, i32) {
    %c0_i32 = arith.constant 0 : i32
    %c0_i32_0 = arith.constant 0 : i32
    %c0_i32_1 = arith.constant 0 : i32
    return %arg0, %c0_i32, %c0_i32_0 : i32, i32, i32
  }
  func.func @transform_1(%arg0: i32) -> (i32, i32, i32) {
    %c0_i32 = arith.constant 0 : i32
    %c0_i32_0 = arith.constant 0 : i32
    %c0_i32_1 = arith.constant 0 : i32
    %c0_i32_2 = arith.constant 0 : i32
    return %c0_i32, %c0_i32_0, %c0_i32_1 : i32, i32, i32
  }
  func.func @transform_2(%arg0: i32) -> (i32, i32) {
    %c0_i32 = arith.constant 0 : i32
    %c0_i32_0 = arith.constant 0 : i32
    %c0_i32_1 = arith.constant 0 : i32
    return %c0_i32, %c0_i32_0 : i32, i32
  }
  func.func @transform_3(%arg0: i32) -> (i32, i32, i32) {
    %c0_i32 = arith.constant 0 : i32
    %c0_i32_0 = arith.constant 0 : i32
    %c0_i32_1 = arith.constant 0 : i32
    return %arg0, %c0_i32, %c0_i32_0 : i32, i32, i32
  }
}

module attributes {stable_mosaic.version = 11 : i64} {
  func.func @_mid_out_kernel(%arg0: i32, %arg1: memref<1x7x64xf32, #tpu.memory_space<vmem>>, %arg2: memref<5x64x64xbf16, #tpu.memory_space<vmem>>, %arg3: memref<1x64xf32, #tpu.memory_space<vmem>>, %arg4: memref<3x64x1xf32, #tpu.memory_space<vmem>>, %arg5: memref<1x1xf32, #tpu.memory_space<vmem>>, %arg6: memref<1x3x1xf32, #tpu.memory_space<vmem>>, %arg7: memref<5x64xf32, #tpu.memory_space<vmem>>) attributes {dimension_semantics = [#tpu.dimension_semantics<parallel>], iteration_bounds = array<i64: 8>, scalar_prefetch = 0 : i64, scratch_operands = 1 : i64, tpu.core_type = #tpu.core_type<tc>, window_params = [{transform_indices = @transform_0, window_bounds = array<i64: 1, 7, 64>}, {pipeline_mode = #tpu.pipeline_mode<synchronous>, transform_indices = @transform_1, window_bounds = array<i64: 5, 64, 64>}, {pipeline_mode = #tpu.pipeline_mode<synchronous>, transform_indices = @transform_2, window_bounds = array<i64: 1, 64>}, {pipeline_mode = #tpu.pipeline_mode<synchronous>, transform_indices = @transform_3, window_bounds = array<i64: 3, 64, 1>}, {pipeline_mode = #tpu.pipeline_mode<synchronous>, transform_indices = @transform_4, window_bounds = array<i64: 1, 1>}, {transform_indices = @transform_5, window_bounds = array<i64: 1, 3, 1>}]} {
    %cst = arith.constant 0.000000e+00 : f32
    %0 = vector.broadcast %cst : f32 to vector<3x64xf32>
    %c0 = arith.constant 0 : index
    %c0_0 = arith.constant 0 : index
    %c0_1 = arith.constant 0 : index
    %1 = vector.load %arg1[%c0, %c0_0, %c0_1] : memref<1x7x64xf32, #tpu.memory_space<vmem>>, vector<1x3x64xf32>
    %2 = vector.shape_cast %1 : vector<1x3x64xf32> to vector<3x64xf32>
    %3 = arith.truncf %2 : vector<3x64xf32> to vector<3x64xbf16>
    %c0_2 = arith.constant 0 : index
    %c0_3 = arith.constant 0 : index
    %c0_4 = arith.constant 0 : index
    %4 = vector.load %arg2[%c0_2, %c0_3, %c0_4] : memref<5x64x64xbf16, #tpu.memory_space<vmem>>, vector<1x64x64xbf16>
    %5 = vector.shape_cast %4 : vector<1x64x64xbf16> to vector<64x64xbf16>
    %cst_5 = arith.constant dense<0.000000e+00> : vector<3x64xf32>
    %6 = tpu.matmul %3, %5, %cst_5 {dimension_numbers = #tpu.dot_dimension_numbers<[1], [0], [0], [1], [0, 0, 1, 1], [], []>} : vector<3x64xbf16>, vector<64x64xbf16>, vector<3x64xf32> -> vector<3x64xf32>
    %7 = arith.addf %0, %6 : vector<3x64xf32>
    %c0_6 = arith.constant 0 : index
    %c1 = arith.constant 1 : index
    %c0_7 = arith.constant 0 : index
    %8 = vector.load %arg1[%c0_6, %c1, %c0_7] : memref<1x7x64xf32, #tpu.memory_space<vmem>>, vector<1x3x64xf32>
    %9 = vector.shape_cast %8 : vector<1x3x64xf32> to vector<3x64xf32>
    %10 = arith.truncf %9 : vector<3x64xf32> to vector<3x64xbf16>
    %c1_8 = arith.constant 1 : index
    %c0_9 = arith.constant 0 : index
    %c0_10 = arith.constant 0 : index
    %11 = vector.load %arg2[%c1_8, %c0_9, %c0_10] : memref<5x64x64xbf16, #tpu.memory_space<vmem>>, vector<1x64x64xbf16>
    %12 = vector.shape_cast %11 : vector<1x64x64xbf16> to vector<64x64xbf16>
    %cst_11 = arith.constant dense<0.000000e+00> : vector<3x64xf32>
    %13 = tpu.matmul %10, %12, %cst_11 {dimension_numbers = #tpu.dot_dimension_numbers<[1], [0], [0], [1], [0, 0, 1, 1], [], []>} : vector<3x64xbf16>, vector<64x64xbf16>, vector<3x64xf32> -> vector<3x64xf32>
    %14 = arith.addf %7, %13 : vector<3x64xf32>
    %c0_12 = arith.constant 0 : index
    %c2 = arith.constant 2 : index
    %c0_13 = arith.constant 0 : index
    %15 = vector.load %arg1[%c0_12, %c2, %c0_13] : memref<1x7x64xf32, #tpu.memory_space<vmem>>, vector<1x3x64xf32>
    %16 = vector.shape_cast %15 : vector<1x3x64xf32> to vector<3x64xf32>
    %17 = arith.truncf %16 : vector<3x64xf32> to vector<3x64xbf16>
    %c2_14 = arith.constant 2 : index
    %c0_15 = arith.constant 0 : index
    %c0_16 = arith.constant 0 : index
    %18 = vector.load %arg2[%c2_14, %c0_15, %c0_16] : memref<5x64x64xbf16, #tpu.memory_space<vmem>>, vector<1x64x64xbf16>
    %19 = vector.shape_cast %18 : vector<1x64x64xbf16> to vector<64x64xbf16>
    %cst_17 = arith.constant dense<0.000000e+00> : vector<3x64xf32>
    %20 = tpu.matmul %17, %19, %cst_17 {dimension_numbers = #tpu.dot_dimension_numbers<[1], [0], [0], [1], [0, 0, 1, 1], [], []>} : vector<3x64xbf16>, vector<64x64xbf16>, vector<3x64xf32> -> vector<3x64xf32>
    %21 = arith.addf %14, %20 : vector<3x64xf32>
    %c0_18 = arith.constant 0 : index
    %c3 = arith.constant 3 : index
    %c0_19 = arith.constant 0 : index
    %22 = vector.load %arg1[%c0_18, %c3, %c0_19] : memref<1x7x64xf32, #tpu.memory_space<vmem>>, vector<1x3x64xf32>
    %23 = vector.shape_cast %22 : vector<1x3x64xf32> to vector<3x64xf32>
    %24 = arith.truncf %23 : vector<3x64xf32> to vector<3x64xbf16>
    %c3_20 = arith.constant 3 : index
    %c0_21 = arith.constant 0 : index
    %c0_22 = arith.constant 0 : index
    %25 = vector.load %arg2[%c3_20, %c0_21, %c0_22] : memref<5x64x64xbf16, #tpu.memory_space<vmem>>, vector<1x64x64xbf16>
    %26 = vector.shape_cast %25 : vector<1x64x64xbf16> to vector<64x64xbf16>
    %cst_23 = arith.constant dense<0.000000e+00> : vector<3x64xf32>
    %27 = tpu.matmul %24, %26, %cst_23 {dimension_numbers = #tpu.dot_dimension_numbers<[1], [0], [0], [1], [0, 0, 1, 1], [], []>} : vector<3x64xbf16>, vector<64x64xbf16>, vector<3x64xf32> -> vector<3x64xf32>
    %28 = arith.addf %21, %27 : vector<3x64xf32>
    %c0_24 = arith.constant 0 : index
    %c4 = arith.constant 4 : index
    %c0_25 = arith.constant 0 : index
    %29 = vector.load %arg1[%c0_24, %c4, %c0_25] : memref<1x7x64xf32, #tpu.memory_space<vmem>>, vector<1x3x64xf32>
    %30 = vector.shape_cast %29 : vector<1x3x64xf32> to vector<3x64xf32>
    %31 = arith.truncf %30 : vector<3x64xf32> to vector<3x64xbf16>
    %c4_26 = arith.constant 4 : index
    %c0_27 = arith.constant 0 : index
    %c0_28 = arith.constant 0 : index
    %32 = vector.load %arg2[%c4_26, %c0_27, %c0_28] : memref<5x64x64xbf16, #tpu.memory_space<vmem>>, vector<1x64x64xbf16>
    %33 = vector.shape_cast %32 : vector<1x64x64xbf16> to vector<64x64xbf16>
    %cst_29 = arith.constant dense<0.000000e+00> : vector<3x64xf32>
    %34 = tpu.matmul %31, %33, %cst_29 {dimension_numbers = #tpu.dot_dimension_numbers<[1], [0], [0], [1], [0, 0, 1, 1], [], []>} : vector<3x64xbf16>, vector<64x64xbf16>, vector<3x64xf32> -> vector<3x64xf32>
    %35 = arith.addf %28, %34 : vector<3x64xf32>
    %c0_30 = arith.constant 0 : index
    %c0_31 = arith.constant 0 : index
    %36 = vector.load %arg3[%c0_30, %c0_31] : memref<1x64xf32, #tpu.memory_space<vmem>>, vector<1x64xf32>
    %37 = vector.broadcast %36 : vector<1x64xf32> to vector<3x64xf32>
    %38 = arith.addf %35, %37 : vector<3x64xf32>
    %cst_32 = arith.constant 0.000000e+00 : f32
    %39 = vector.broadcast %cst_32 : f32 to vector<3x64xf32>
    %40 = arith.cmpf ogt, %38, %39 : vector<3x64xf32>
    %cst_33 = arith.constant 0.00999999977 : f32
    %41 = vector.broadcast %cst_33 : f32 to vector<3x64xf32>
    %42 = arith.mulf %41, %38 : vector<3x64xf32>
    %43 = arith.select %40, %38, %42 : vector<3x64xi1>, vector<3x64xf32>
    %cst_34 = arith.constant 0.000000e+00 : f32
    %44 = vector.broadcast %cst_34 : f32 to vector<1x64xf32>
    %c0_35 = arith.constant 0 : index
    %c0_36 = arith.constant 0 : index
    %45 = vector.load %arg7[%c0_35, %c0_36] : memref<5x64xf32, #tpu.memory_space<vmem>>, vector<1x64xf32>
    tpu.vector_store %arg7[%c0_35, %c0_36], %44 {strides = array<i32>} : memref<5x64xf32, #tpu.memory_space<vmem>>, vector<1x64xf32>,
    %cst_37 = arith.constant 0.000000e+00 : f32
    %46 = vector.broadcast %cst_37 : f32 to vector<1x64xf32>
    %c4_38 = arith.constant 4 : index
    %c0_39 = arith.constant 0 : index
    %47 = vector.load %arg7[%c4_38, %c0_39] : memref<5x64xf32, #tpu.memory_space<vmem>>, vector<1x64xf32>
    tpu.vector_store %arg7[%c4_38, %c0_39], %46 {strides = array<i32>} : memref<5x64xf32, #tpu.memory_space<vmem>>, vector<1x64xf32>,
    %c1_40 = arith.constant 1 : index
    %c0_41 = arith.constant 0 : index
    %48 = vector.load %arg7[%c1_40, %c0_41] : memref<5x64xf32, #tpu.memory_space<vmem>>, vector<3x64xf32>
    tpu.vector_store %arg7[%c1_40, %c0_41], %43 {strides = array<i32>} : memref<5x64xf32, #tpu.memory_space<vmem>>, vector<3x64xf32>,
    %cst_42 = arith.constant 0.000000e+00 : f32
    %49 = vector.broadcast %cst_42 : f32 to vector<3x1xf32>
    %c0_43 = arith.constant 0 : index
    %c0_44 = arith.constant 0 : index
    %50 = vector.load %arg7[%c0_43, %c0_44] : memref<5x64xf32, #tpu.memory_space<vmem>>, vector<3x64xf32>
    %c0_45 = arith.constant 0 : index
    %c0_46 = arith.constant 0 : index
    %c0_47 = arith.constant 0 : index
    %51 = vector.load %arg4[%c0_45, %c0_46, %c0_47] : memref<3x64x1xf32, #tpu.memory_space<vmem>>, vector<1x64x1xf32>
    %52 = vector.shape_cast %51 : vector<1x64x1xf32> to vector<64x1xf32>
    %cst_48 = arith.constant dense<0.000000e+00> : vector<3x1xf32>
    %53 = tpu.matmul %50, %52, %cst_48 {dimension_numbers = #tpu.dot_dimension_numbers<[1], [0], [0], [1], [0, 0, 1, 1], [], []>} : vector<3x64xf32>, vector<64x1xf32>, vector<3x1xf32> -> vector<3x1xf32>
    %54 = arith.addf %49, %53 : vector<3x1xf32>
    %c1_49 = arith.constant 1 : index
    %c0_50 = arith.constant 0 : index
    %55 = vector.load %arg7[%c1_49, %c0_50] : memref<5x64xf32, #tpu.memory_space<vmem>>, vector<3x64xf32>
    %c1_51 = arith.constant 1 : index
    %c0_52 = arith.constant 0 : index
    %c0_53 = arith.constant 0 : index
    %56 = vector.load %arg4[%c1_51, %c0_52, %c0_53] : memref<3x64x1xf32, #tpu.memory_space<vmem>>, vector<1x64x1xf32>
    %57 = vector.shape_cast %56 : vector<1x64x1xf32> to vector<64x1xf32>
    %cst_54 = arith.constant dense<0.000000e+00> : vector<3x1xf32>
    %58 = tpu.matmul %55, %57, %cst_54 {dimension_numbers = #tpu.dot_dimension_numbers<[1], [0], [0], [1], [0, 0, 1, 1], [], []>} : vector<3x64xf32>, vector<64x1xf32>, vector<3x1xf32> -> vector<3x1xf32>
    %59 = arith.addf %54, %58 : vector<3x1xf32>
    %c2_55 = arith.constant 2 : index
    %c0_56 = arith.constant 0 : index
    %60 = vector.load %arg7[%c2_55, %c0_56] : memref<5x64xf32, #tpu.memory_space<vmem>>, vector<3x64xf32>
    %c2_57 = arith.constant 2 : index
    %c0_58 = arith.constant 0 : index
    %c0_59 = arith.constant 0 : index
    %61 = vector.load %arg4[%c2_57, %c0_58, %c0_59] : memref<3x64x1xf32, #tpu.memory_space<vmem>>, vector<1x64x1xf32>
    %62 = vector.shape_cast %61 : vector<1x64x1xf32> to vector<64x1xf32>
    %cst_60 = arith.constant dense<0.000000e+00> : vector<3x1xf32>
    %63 = tpu.matmul %60, %62, %cst_60 {dimension_numbers = #tpu.dot_dimension_numbers<[1], [0], [0], [1], [0, 0, 1, 1], [], []>} : vector<3x64xf32>, vector<64x1xf32>, vector<3x1xf32> -> vector<3x1xf32>
    %64 = arith.addf %59, %63 : vector<3x1xf32>
    %c0_61 = arith.constant 0 : index
    %c0_62 = arith.constant 0 : index
    %65 = vector.load %arg5[%c0_61, %c0_62] : memref<1x1xf32, #tpu.memory_space<vmem>>, vector<1x1xf32>
    %66 = vector.broadcast %65 : vector<1x1xf32> to vector<3x1xf32>
    %67 = arith.addf %64, %66 : vector<3x1xf32>
    %c0_63 = arith.constant 0 : index
    %c0_64 = arith.constant 0 : index
    %c0_65 = arith.constant 0 : index
    %68 = vector.load %arg6[%c0_63, %c0_64, %c0_65] : memref<1x3x1xf32, #tpu.memory_space<vmem>>, vector<1x3x1xf32>
    %69 = vector.shape_cast %68 : vector<1x3x1xf32> to vector<3x1xf32>
    %70 = vector.shape_cast %67 : vector<3x1xf32> to vector<1x3x1xf32>
    tpu.vector_store %arg6[%c0_63, %c0_64, %c0_65], %70 {strides = array<i32>} : memref<1x3x1xf32, #tpu.memory_space<vmem>>, vector<1x3x1xf32>,
    return
  }
  func.func @transform_0(%arg0: i32) -> (i32, i32, i32) {
    %c0_i32 = arith.constant 0 : i32
    %c0_i32_0 = arith.constant 0 : i32
    %c0_i32_1 = arith.constant 0 : i32
    return %arg0, %c0_i32, %c0_i32_0 : i32, i32, i32
  }
  func.func @transform_1(%arg0: i32) -> (i32, i32, i32) {
    %c0_i32 = arith.constant 0 : i32
    %c0_i32_0 = arith.constant 0 : i32
    %c0_i32_1 = arith.constant 0 : i32
    %c0_i32_2 = arith.constant 0 : i32
    return %c0_i32, %c0_i32_0, %c0_i32_1 : i32, i32, i32
  }
  func.func @transform_2(%arg0: i32) -> (i32, i32) {
    %c0_i32 = arith.constant 0 : i32
    %c0_i32_0 = arith.constant 0 : i32
    %c0_i32_1 = arith.constant 0 : i32
    return %c0_i32, %c0_i32_0 : i32, i32
  }
  func.func @transform_3(%arg0: i32) -> (i32, i32, i32) {
    %c0_i32 = arith.constant 0 : i32
    %c0_i32_0 = arith.constant 0 : i32
    %c0_i32_1 = arith.constant 0 : i32
    %c0_i32_2 = arith.constant 0 : i32
    return %c0_i32, %c0_i32_0, %c0_i32_1 : i32, i32, i32
  }
  func.func @transform_4(%arg0: i32) -> (i32, i32) {
    %c0_i32 = arith.constant 0 : i32
    %c0_i32_0 = arith.constant 0 : i32
    %c0_i32_1 = arith.constant 0 : i32
    return %c0_i32, %c0_i32_0 : i32, i32
  }
  func.func @transform_5(%arg0: i32) -> (i32, i32, i32) {
    %c0_i32 = arith.constant 0 : i32
    %c0_i32_0 = arith.constant 0 : i32
    %c0_i32_1 = arith.constant 0 : i32
    return %arg0, %c0_i32, %c0_i32_0 : i32, i32, i32
  }
}

</mosaic_0001>

<llo_original>
// kernel: sub_discriminator_mpd_forward.3
$region0: #{sub_discriminator_mpd_forward.3}
  #allocation0 [shape = 'u32[]', space=smem, size = 0x4, offset = 0x4, fixed_abs, tag = 'smem constant byte address 0x4 - core index']
  #allocation1 [shape = 'u32[144,128]{1,0:T(1,128)}', space=vmem, size = 0x12000, scoped, tag = 'internal scratch']
  %s0 = inlined_call_operand.vmem [shape: f32[8,28,1], index: 0, kind: input, shape index: {}]
  %s1 = inlined_call_operand.vmem [shape: f32[5,1,32], index: 1, kind: input, shape index: {}]
  %s2 = inlined_call_operand.vmem [shape: f32[1,32], index: 2, kind: input, shape index: {}]
  %s3 = inlined_call_operand.vmem [shape: f32[8,8,32], index: 3, kind: output, shape index: {}]
  %s4 = sld [smem:[#allocation0]]
  $region45: #{sub_discriminator_mpd_forward.3} parent=0
    _
  %s6 = ssub.s32 1, %s4
  %s7 = scalar_select 0, %s6, %s4
  loop: start=0, step=1, limit=10
  $region2: #{sub_discriminator_mpd_forward.3} parent=0 // loop_pre_header
    _
  $region3: #{sub_discriminator_mpd_forward.3} parent=0 // loop_header
    %s9 = sphi 0, %s13
    %p10 = scmp.ge.s32.totalorder %s9, 10
    %s19 = sphi 0, %s21
    %s22 = sphi 0, %s19
    %s23 = sphi 0, %s22
    %s39 = sphi 0, %s23
    %s43 = sphi 0, %s43
    %s45 = sphi 0, %s43
    %s46 = sphi 0, %s45
    %s60 = sphi 0, %s46
    %s64 = sphi 0, %s64
    %s66 = sphi 0, %s64
    %s67 = sphi 0, %s66
    %s81 = sphi 0, %s67
    %s87 = sphi 0, %s89
    %s90 = sphi 0, %s87
    %s91 = sphi 0, %s90
    %s107 = sphi 0, %s91
  $region4: #{sub_discriminator_mpd_forward.3} parent=0 // loop_header_branch
    %12 = sbr.rel (%p10) target = $region8
  $region5: #{sub_discriminator_mpd_forward.3} parent=0 // loop_body
    %s14 = ssub.s32 %s9, 1
    %s15 = ssub.s32 %s9, 2
    %s16 = sadd.s32 %s9, 1
    %s17 = ssub.s32 %s9, %s16
    %p18 = scmp.eq.s32.totalorder %s17, 0
    %s20 = sadd.s32 %s19, 1
    %s21 = scalar_select %p18, %s19, %s20
    %p24 = pneg %p18
    %p25 = scmp.eq.s32.totalorder %s9, 7
    %p26 = por %p24, %p25
    %p27 = scmp.ne.s32.totalorder %s19, %s22
    %p28 = scmp.eq.s32.totalorder %s9, 0
    %p29 = por %p27, %p28
    %p30 = scmp.ne.s32.totalorder %s19, %s22
    %p31 = scmp.eq.s32.totalorder %s14, 7
    %p32 = por %p30, %p31
    %p33 = scmp.ne.s32.totalorder %s22, %s23
    %p34 = scmp.eq.s32.totalorder %s14, 0
    %p35 = por %p33, %p34
    %p36 = scmp.ne.s32.totalorder %s22, %s23
    %p37 = scmp.eq.s32.totalorder %s15, 7
    %p38 = por %p36, %p37
    %p40 = scmp.ne.s32.totalorder %s23, %s39
    %p41 = scmp.eq.s32.totalorder %s15, 0
    %p42 = por %p40, %p41
    %s44 = sadd.s32 %s43, 1
    %p47 = scmp.eq.s32.totalorder %s9, 7
    %p48 = scmp.ne.s32.totalorder %s43, %s45
    %p49 = scmp.eq.s32.totalorder %s9, 0
    %p50 = por %p48, %p49
    %p51 = scmp.ne.s32.totalorder %s43, %s45
    %p52 = scmp.eq.s32.totalorder %s14, 7
    %p53 = por %p51, %p52
    %p54 = scmp.ne.s32.totalorder %s45, %s46
    %p55 = scmp.eq.s32.totalorder %s14, 0
    %p56 = por %p54, %p55
    %p57 = scmp.ne.s32.totalorder %s45, %s46
    %p58 = scmp.eq.s32.totalorder %s15, 7
    %p59 = por %p57, %p58
    %p61 = scmp.ne.s32.totalorder %s46, %s60
    %p62 = scmp.eq.s32.totalorder %s15, 0
    %p63 = por %p61, %p62
    %s65 = sadd.s32 %s64, 1
    %p68 = scmp.eq.s32.totalorder %s9, 7
    %p69 = scmp.ne.s32.totalorder %s64, %s66
    %p70 = scmp.eq.s32.totalorder %s9, 0
    %p71 = por %p69, %p70
    %p72 = scmp.ne.s32.totalorder %s64, %s66
    %p73 = scmp.eq.s32.totalorder %s14, 7
    %p74 = por %p72, %p73
    %p75 = scmp.ne.s32.totalorder %s66, %s67
    %p76 = scmp.eq.s32.totalorder %s14, 0
    %p77 = por %p75, %p76
    %p78 = scmp.ne.s32.totalorder %s66, %s67
    %p79 = scmp.eq.s32.totalorder %s15, 7
    %p80 = por %p78, %p79
    %p82 = scmp.ne.s32.totalorder %s67, %s81
    %p83 = scmp.eq.s32.totalorder %s15, 0
    %p84 = por %p82, %p83
    %s85 = ssub.s32 %s9, %s16
    %p86 = scmp.eq.s32.totalorder %s85, 0
    %s88 = sadd.s32 %s87, 1
    %s89 = scalar_select %p86, %s87, %s88
    %p92 = pneg %p86
    %p93 = scmp.eq.s32.totalorder %s9, 7
    %p94 = por %p92, %p93
    %p95 = scmp.ne.s32.totalorder %s87, %s90
    %p96 = scmp.eq.s32.totalorder %s9, 0
    %p97 = por %p95, %p96
    %p98 = scmp.ne.s32.totalorder %s87, %s90
    %p99 = scmp.eq.s32.totalorder %s14, 7
    %p100 = por %p98, %p99
    %p101 = scmp.ne.s32.totalorder %s90, %s91
    %p102 = scmp.eq.s32.totalorder %s14, 0
    %p103 = por %p101, %p102
    %p104 = scmp.ne.s32.totalorder %s90, %s91
    %p105 = scmp.eq.s32.totalorder %s15, 7
    %p106 = por %p104, %p105
    %p108 = scmp.ne.s32.totalorder %s91, %s107
    %p109 = scmp.eq.s32.totalorder %s15, 0
    %p110 = por %p108, %p109
    %p111 = scmp.le.s32.totalorder 1, %s9
    %p112 = scmp.lt.s32.totalorder %s9, 9
    %p113 = pnand %p111, %p112
    %p114 = pneg %p113
    // Predicated region
    $region9: #{sub_discriminator_mpd_forward.3} parent=5 // pred_check
      _
    $region10: #{sub_discriminator_mpd_forward.3} parent=5 // pred_check_branch
      %116 = sbr.rel (%p113) target = $region12
    $region11: #{sub_discriminator_mpd_forward.3} parent=5 // pred_region
      %s117 = ssub.s32 %s9, 1
      // Predicated region
      $region13: #{sub_discriminator_mpd_forward.3} parent=11 // pred_check
        %p118 = pneg %p56
      $region14: #{sub_discriminator_mpd_forward.3} parent=11 // pred_check_branch
        %120 = sbr.rel (%p118) target = $region16
      $region15: #{sub_discriminator_mpd_forward.3} parent=11 // pred_region
        _
      $region16: #{sub_discriminator_mpd_forward.3} parent=11 // pred_fallthru
        _
      // Predicated region
      $region17: #{sub_discriminator_mpd_forward.3} parent=11 // pred_check
        %p121 = pneg %p77
      $region18: #{sub_discriminator_mpd_forward.3} parent=11 // pred_check_branch
        %123 = sbr.rel (%p121) target = $region20
      $region19: #{sub_discriminator_mpd_forward.3} parent=11 // pred_region
        _
      $region20: #{sub_discriminator_mpd_forward.3} parent=11 // pred_fallthru
        _
    $region12: #{sub_discriminator_mpd_forward.3} parent=5 // pred_fallthru
      _
    %p124 = scmp.lt.s32.totalorder %s9, 8
    // Predicated region
    $region21: #{sub_discriminator_mpd_forward.3} parent=5 // pred_check
      %p125 = pneg %p124
    $region22: #{sub_discriminator_mpd_forward.3} parent=5 // pred_check_branch
      %127 = sbr.rel (%p125) target = $region24
    $region23: #{sub_discriminator_mpd_forward.3} parent=5 // pred_region
      // Predicated region
      $region25: #{sub_discriminator_mpd_forward.3} parent=23 // pred_check
        %p128 = pneg %p29
      $region26: #{sub_discriminator_mpd_forward.3} parent=23 // pred_check_branch
        %130 = sbr.rel (%p128) target = $region28
      $region27: #{sub_discriminator_mpd_forward.3} parent=23 // pred_region
        %p131 = scmp.lt.s32.totalorder %s9, 7
        %s132 = scalar_select %p131, %s9, 7
        %s133 = smul.addr %s132, 4
        %s134 = smul.addr %s133, 8
        %s135 = scalar_lea.vmem %s0, %s134
      $region28: #{sub_discriminator_mpd_forward.3} parent=23 // pred_fallthru
        _
    $region24: #{sub_discriminator_mpd_forward.3} parent=5 // pred_fallthru
      _
    %p136 = scmp.le.s32.totalorder 1, %s9
    %p137 = scmp.lt.s32.totalorder %s9, 9
    %p138 = pnand %p136, %p137
    %p139 = pneg %p138
    // Predicated region
    $region29: #{sub_discriminator_mpd_forward.3} parent=5 // pred_check
      _
    $region30: #{sub_discriminator_mpd_forward.3} parent=5 // pred_check_branch
      %141 = sbr.rel (%p138) target = $region32
    $region31: #{sub_discriminator_mpd_forward.3} parent=5 // pred_region
      %s142 = ssub.s32 %s9, 1
      %p143 = scmp.lt.s32.totalorder %s14, 7
      %s144 = scalar_select %p143, %s14, 7
      %s145 = smul.addr %s144, 4
      %s146 = smul.addr %s145, 8
      %s147 = scalar_lea.vmem %s0, %s146
      %p148 = pneg %p35
      %p149 = pneg %p32
      %p150 = pneg %p56
      %p151 = pneg %p53
      %p152 = pneg %p77
      %p153 = pneg %p74
      %p154 = pneg %p103
      %p155 = pneg %p100
      %p156 = scmp.lt.s32.totalorder %s14, 7
      %s157 = scalar_select %p156, %s14, 7
      %s158 = smul.addr %s157, 8
      %s159 = scalar_lea.vmem %s3, %s158
      %p160 = scmp.lt.s32.totalorder %s14, 7
      %s161 = scalar_select %p160, %s14, 7
      %s162 = smul.addr %s161, 4
      %s163 = smul.addr %s162, 8
      %s164 = scalar_lea.vmem %s0, %s163
      %p165 = scmp.lt.s32.totalorder %s14, 7
      %s166 = scalar_select %p165, %s14, 7
      %s167 = smul.addr %s166, 8
      %s168 = scalar_lea.vmem %s3, %s167
      %v169 = vld [vmem:[%s164] ss:$3 sm:$0xff]
      %v170 = vld [vmem:[%s1] sm:$0x1]
      %172 = vset.pattern.permute.xlu0 0
      %173 = vperm.xlu0 %172, %v169
      %v174 = vpop.permute.xlu0 %173
      %v177 = vlaneseq
      %v178 = vshrl.u32 %v177, 7
      %v179 = vsub.s32 0, %v178
      %v180 = vrot.slane %v170, %v179
      %v182 = vmul.f32 %v174, %v180
      %v183 = vadd.f32 %v182, 0.0
      %s184 = scalar_lea.vmem %s164, 1
      %v185 = vld [vmem:[%s184] ss:$3 sm:$0xff]
      %s186 = scalar_lea.vmem %s1, 1
      %v187 = vld [vmem:[%s186] sm:$0x1]
      %189 = vset.pattern.permute.xlu0 0
      %190 = vperm.xlu0 %189, %v185
      %v191 = vpop.permute.xlu0 %190
      %v194 = vlaneseq
      %v195 = vshrl.u32 %v194, 7
      %v196 = vsub.s32 0, %v195
      %v197 = vrot.slane %v187, %v196
      %v199 = vmul.f32 %v191, %v197
      %v200 = vadd.f32 %v183, %v199
      %s201 = scalar_lea.vmem %s164, 2
      %v202 = vld [vmem:[%s201] ss:$3 sm:$0xff]
      %s203 = scalar_lea.vmem %s1, 2
      %v204 = vld [vmem:[%s203] sm:$0x1]
      %206 = vset.pattern.permute.xlu0 0
      %207 = vperm.xlu0 %206, %v202
      %v208 = vpop.permute.xlu0 %207
      %v211 = vlaneseq
      %v212 = vshrl.u32 %v211, 7
      %v213 = vsub.s32 0, %v212
      %v214 = vrot.slane %v204, %v213
      %v216 = vmul.f32 %v208, %v214
      %v217 = vadd.f32 %v200, %v216
      %s218 = scalar_lea.vmem %s164, 3
      %v219 = vld [vmem:[%s218] ss:$3 sm:$0xff]
      %s220 = scalar_lea.vmem %s1, 3
      %v221 = vld [vmem:[%s220] sm:$0x1]
      %223 = vset.pattern.permute.xlu0 0
      %224 = vperm.xlu0 %223, %v219
      %v225 = vpop.permute.xlu0 %224
      %v228 = vlaneseq
      %v229 = vshrl.u32 %v228, 7
      %v230 = vsub.s32 0, %v229
      %v231 = vrot.slane %v221, %v230
      %v233 = vmul.f32 %v225, %v231
      %v234 = vadd.f32 %v217, %v233
      %s235 = scalar_lea.vmem %s164, 4
      %v236 = vld [vmem:[%s235] ss:$3 sm:$0xff]
      %s237 = scalar_lea.vmem %s1, 4
      %v238 = vld [vmem:[%s237] sm:$0x1]
      %240 = vset.pattern.permute.xlu0 0
      %241 = vperm.xlu0 %240, %v236
      %v242 = vpop.permute.xlu0 %241
      %v245 = vlaneseq
      %v246 = vshrl.u32 %v245, 7
      %v247 = vsub.s32 0, %v246
      %v248 = vrot.slane %v238, %v247
      %v250 = vmul.f32 %v242, %v248
      %v251 = vadd.f32 %v234, %v250
      %v252 = vld [vmem:[%s2] sm:$0x1]
      %v254 = vlaneseq
      %v255 = vshrl.u32 %v254, 7
      %v256 = vsub.s32 0, %v255
      %v257 = vrot.slane %v252, %v256
      %v259 = vadd.f32 %v251, %v257
      %vm260 = vcmp.gt.f32.partialorder %v259, 0.0
      %v261 = vmul.f32 %v259, 0.01
      %v262 = vsel %vm260, %v259, %v261
      %vm263 = vcmask 261120
      %264 = vst.msk [vmem:[%s168] sm:$0xff] %vm263, %v262
      %p265 = scmp.lt.s32.totalorder %s14, 7
      %s266 = scalar_select %p265, %s14, 7
      %s267 = smul.addr %s266, 8
      %s268 = scalar_lea.vmem %s3, %s267
      // Predicated region
      $region33: #{sub_discriminator_mpd_forward.3} parent=31 // pred_check
        %p269 = pneg %p100
      $region34: #{sub_discriminator_mpd_forward.3} parent=31 // pred_check_branch
        %271 = sbr.rel (%p269) target = $region36
      $region35: #{sub_discriminator_mpd_forward.3} parent=31 // pred_region
        _
      $region36: #{sub_discriminator_mpd_forward.3} parent=31 // pred_fallthru
        _
    $region32: #{sub_discriminator_mpd_forward.3} parent=5 // pred_fallthru
      _
    %p272 = scmp.le.s32.totalorder 2, %s9
    // Predicated region
    $region37: #{sub_discriminator_mpd_forward.3} parent=5 // pred_check
      %p273 = pneg %p272
    $region38: #{sub_discriminator_mpd_forward.3} parent=5 // pred_check_branch
      %275 = sbr.rel (%p273) target = $region40
    $region39: #{sub_discriminator_mpd_forward.3} parent=5 // pred_region
      %s276 = ssub.s32 %s9, 2
      // Predicated region
      $region41: #{sub_discriminator_mpd_forward.3} parent=39 // pred_check
        %p277 = pneg %p106
      $region42: #{sub_discriminator_mpd_forward.3} parent=39 // pred_check_branch
        %279 = sbr.rel (%p277) target = $region44
      $region43: #{sub_discriminator_mpd_forward.3} parent=39 // pred_region
        %p280 = scmp.lt.s32.totalorder %s15, 7
        %s281 = scalar_select %p280, %s15, 7
        %s282 = smul.addr %s281, 8
        %s283 = scalar_lea.vmem %s3, %s282
      $region44: #{sub_discriminator_mpd_forward.3} parent=39 // pred_fallthru
        _
    $region40: #{sub_discriminator_mpd_forward.3} parent=5 // pred_fallthru
      _
  $region6: #{sub_discriminator_mpd_forward.3} parent=0 // loop_footer
    %s13 = sadd.s32 1, %s9
  $region7: #{sub_discriminator_mpd_forward.3} parent=0 // loop_footer_branch
    %8 = sbr.rel target = $region3
  $region8: #{sub_discriminator_mpd_forward.3} parent=0 // loop_exit
    _

// kernel: sub_discriminator_mpd_forward.4
$region0: #{sub_discriminator_mpd_forward.4}
  #allocation0 [shape = 'u32[]', space=smem, size = 0x4, offset = 0x4, fixed_abs, tag = 'smem constant byte address 0x4 - core index']
  #allocation1 [shape = 'u32[144,128]{1,0:T(1,128)}', space=vmem, size = 0x12000, scoped, tag = 'internal scratch']
  %s0 = inlined_call_operand.vmem [shape: f32[8,12,32], index: 0, kind: input, shape index: {}]
  %s1 = inlined_call_operand.vmem [shape: bf16[5,32,64], index: 1, kind: input, shape index: {}]
  %s2 = inlined_call_operand.vmem [shape: f32[1,64], index: 2, kind: input, shape index: {}]
  %s3 = inlined_call_operand.vmem [shape: f32[8,3,64], index: 3, kind: output, shape index: {}]
  %s4 = sld [smem:[#allocation0]]
  $region45: #{sub_discriminator_mpd_forward.4} parent=0
    _
  %s6 = ssub.s32 1, %s4
  %s7 = scalar_select 0, %s6, %s4
  loop: start=0, step=1, limit=10
  $region2: #{sub_discriminator_mpd_forward.4} parent=0 // loop_pre_header
    _
  $region3: #{sub_discriminator_mpd_forward.4} parent=0 // loop_header
    %s9 = sphi 0, %s13
    %p10 = scmp.ge.s32.totalorder %s9, 10
    %s19 = sphi 0, %s21
    %s22 = sphi 0, %s19
    %s23 = sphi 0, %s22
    %s39 = sphi 0, %s23
    %s43 = sphi 0, %s43
    %s45 = sphi 0, %s43
    %s46 = sphi 0, %s45
    %s60 = sphi 0, %s46
    %s64 = sphi 0, %s64
    %s66 = sphi 0, %s64
    %s67 = sphi 0, %s66
    %s81 = sphi 0, %s67
    %s87 = sphi 0, %s89
    %s90 = sphi 0, %s87
    %s91 = sphi 0, %s90
    %s107 = sphi 0, %s91
  $region4: #{sub_discriminator_mpd_forward.4} parent=0 // loop_header_branch
    %12 = sbr.rel (%p10) target = $region8
  $region5: #{sub_discriminator_mpd_forward.4} parent=0 // loop_body
    %s14 = ssub.s32 %s9, 1
    %s15 = ssub.s32 %s9, 2
    %s16 = sadd.s32 %s9, 1
    %s17 = ssub.s32 %s9, %s16
    %p18 = scmp.eq.s32.totalorder %s17, 0
    %s20 = sadd.s32 %s19, 1
    %s21 = scalar_select %p18, %s19, %s20
    %p24 = pneg %p18
    %p25 = scmp.eq.s32.totalorder %s9, 7
    %p26 = por %p24, %p25
    %p27 = scmp.ne.s32.totalorder %s19, %s22
    %p28 = scmp.eq.s32.totalorder %s9, 0
    %p29 = por %p27, %p28
    %p30 = scmp.ne.s32.totalorder %s19, %s22
    %p31 = scmp.eq.s32.totalorder %s14, 7
    %p32 = por %p30, %p31
    %p33 = scmp.ne.s32.totalorder %s22, %s23
    %p34 = scmp.eq.s32.totalorder %s14, 0
    %p35 = por %p33, %p34
    %p36 = scmp.ne.s32.totalorder %s22, %s23
    %p37 = scmp.eq.s32.totalorder %s15, 7
    %p38 = por %p36, %p37
    %p40 = scmp.ne.s32.totalorder %s23, %s39
    %p41 = scmp.eq.s32.totalorder %s15, 0
    %p42 = por %p40, %p41
    %s44 = sadd.s32 %s43, 1
    %p47 = scmp.eq.s32.totalorder %s9, 7
    %p48 = scmp.ne.s32.totalorder %s43, %s45
    %p49 = scmp.eq.s32.totalorder %s9, 0
    %p50 = por %p48, %p49
    %p51 = scmp.ne.s32.totalorder %s43, %s45
    %p52 = scmp.eq.s32.totalorder %s14, 7
    %p53 = por %p51, %p52
    %p54 = scmp.ne.s32.totalorder %s45, %s46
    %p55 = scmp.eq.s32.totalorder %s14, 0
    %p56 = por %p54, %p55
    %p57 = scmp.ne.s32.totalorder %s45, %s46
    %p58 = scmp.eq.s32.totalorder %s15, 7
    %p59 = por %p57, %p58
    %p61 = scmp.ne.s32.totalorder %s46, %s60
    %p62 = scmp.eq.s32.totalorder %s15, 0
    %p63 = por %p61, %p62
    %s65 = sadd.s32 %s64, 1
    %p68 = scmp.eq.s32.totalorder %s9, 7
    %p69 = scmp.ne.s32.totalorder %s64, %s66
    %p70 = scmp.eq.s32.totalorder %s9, 0
    %p71 = por %p69, %p70
    %p72 = scmp.ne.s32.totalorder %s64, %s66
    %p73 = scmp.eq.s32.totalorder %s14, 7
    %p74 = por %p72, %p73
    %p75 = scmp.ne.s32.totalorder %s66, %s67
    %p76 = scmp.eq.s32.totalorder %s14, 0
    %p77 = por %p75, %p76
    %p78 = scmp.ne.s32.totalorder %s66, %s67
    %p79 = scmp.eq.s32.totalorder %s15, 7
    %p80 = por %p78, %p79
    %p82 = scmp.ne.s32.totalorder %s67, %s81
    %p83 = scmp.eq.s32.totalorder %s15, 0
    %p84 = por %p82, %p83
    %s85 = ssub.s32 %s9, %s16
    %p86 = scmp.eq.s32.totalorder %s85, 0
    %s88 = sadd.s32 %s87, 1
    %s89 = scalar_select %p86, %s87, %s88
    %p92 = pneg %p86
    %p93 = scmp.eq.s32.totalorder %s9, 7
    %p94 = por %p92, %p93
    %p95 = scmp.ne.s32.totalorder %s87, %s90
    %p96 = scmp.eq.s32.totalorder %s9, 0
    %p97 = por %p95, %p96
    %p98 = scmp.ne.s32.totalorder %s87, %s90
    %p99 = scmp.eq.s32.totalorder %s14, 7
    %p100 = por %p98, %p99
    %p101 = scmp.ne.s32.totalorder %s90, %s91
    %p102 = scmp.eq.s32.totalorder %s14, 0
    %p103 = por %p101, %p102
    %p104 = scmp.ne.s32.totalorder %s90, %s91
    %p105 = scmp.eq.s32.totalorder %s15, 7
    %p106 = por %p104, %p105
    %p108 = scmp.ne.s32.totalorder %s91, %s107
    %p109 = scmp.eq.s32.totalorder %s15, 0
    %p110 = por %p108, %p109
    %p111 = scmp.le.s32.totalorder 1, %s9
    %p112 = scmp.lt.s32.totalorder %s9, 9
    %p113 = pnand %p111, %p112
    %p114 = pneg %p113
    // Predicated region
    $region9: #{sub_discriminator_mpd_forward.4} parent=5 // pred_check
      _
    $region10: #{sub_discriminator_mpd_forward.4} parent=5 // pred_check_branch
      %116 = sbr.rel (%p113) target = $region12
    $region11: #{sub_discriminator_mpd_forward.4} parent=5 // pred_region
      %s117 = ssub.s32 %s9, 1
      // Predicated region
      $region13: #{sub_discriminator_mpd_forward.4} parent=11 // pred_check
        %p118 = pneg %p56
      $region14: #{sub_discriminator_mpd_forward.4} parent=11 // pred_check_branch
        %120 = sbr.rel (%p118) target = $region16
      $region15: #{sub_discriminator_mpd_forward.4} parent=11 // pred_region
        _
      $region16: #{sub_discriminator_mpd_forward.4} parent=11 // pred_fallthru
        _
      // Predicated region
      $region17: #{sub_discriminator_mpd_forward.4} parent=11 // pred_check
        %p121 = pneg %p77
      $region18: #{sub_discriminator_mpd_forward.4} parent=11 // pred_check_branch
        %123 = sbr.rel (%p121) target = $region20
      $region19: #{sub_discriminator_mpd_forward.4} parent=11 // pred_region
        _
      $region20: #{sub_discriminator_mpd_forward.4} parent=11 // pred_fallthru
        _
    $region12: #{sub_discriminator_mpd_forward.4} parent=5 // pred_fallthru
      _
    %p124 = scmp.lt.s32.totalorder %s9, 8
    // Predicated region
    $region21: #{sub_discriminator_mpd_forward.4} parent=5 // pred_check
      %p125 = pneg %p124
    $region22: #{sub_discriminator_mpd_forward.4} parent=5 // pred_check_branch
      %127 = sbr.rel (%p125) target = $region24
    $region23: #{sub_discriminator_mpd_forward.4} parent=5 // pred_region
      // Predicated region
      $region25: #{sub_discriminator_mpd_forward.4} parent=23 // pred_check
        %p128 = pneg %p29
      $region26: #{sub_discriminator_mpd_forward.4} parent=23 // pred_check_branch
        %130 = sbr.rel (%p128) target = $region28
      $region27: #{sub_discriminator_mpd_forward.4} parent=23 // pred_region
        %p131 = scmp.lt.s32.totalorder %s9, 7
        %s132 = scalar_select %p131, %s9, 7
        %s133 = smul.addr %s132, 2
        %s134 = smul.addr %s133, 8
        %s135 = scalar_lea.vmem %s0, %s134
      $region28: #{sub_discriminator_mpd_forward.4} parent=23 // pred_fallthru
        _
    $region24: #{sub_discriminator_mpd_forward.4} parent=5 // pred_fallthru
      _
    %p136 = scmp.le.s32.totalorder 1, %s9
    %p137 = scmp.lt.s32.totalorder %s9, 9
    %p138 = pnand %p136, %p137
    %p139 = pneg %p138
    // Predicated region
    $region29: #{sub_discriminator_mpd_forward.4} parent=5 // pred_check
      _
    $region30: #{sub_discriminator_mpd_forward.4} parent=5 // pred_check_branch
      %141 = sbr.rel (%p138) target = $region32
    $region31: #{sub_discriminator_mpd_forward.4} parent=5 // pred_region
      %s142 = ssub.s32 %s9, 1
      %p143 = scmp.lt.s32.totalorder %s14, 7
      %s144 = scalar_select %p143, %s14, 7
      %s145 = smul.addr %s144, 2
      %s146 = smul.addr %s145, 8
      %s147 = scalar_lea.vmem %s0, %s146
      %p148 = pneg %p35
      %p149 = pneg %p32
      %p150 = pneg %p56
      %p151 = pneg %p53
      %p152 = pneg %p77
      %p153 = pneg %p74
      %p154 = pneg %p103
      %p155 = pneg %p100
      %p156 = scmp.lt.s32.totalorder %s14, 7
      %s157 = scalar_select %p156, %s14, 7
      %s158 = smul.addr %s157, 4
      %s159 = scalar_lea.vmem %s3, %s158
      %p160 = scmp.lt.s32.totalorder %s14, 7
      %s161 = scalar_select %p160, %s14, 7
      %s162 = smul.addr %s161, 2
      %s163 = smul.addr %s162, 8
      %s164 = scalar_lea.vmem %s0, %s163
      %p165 = scmp.lt.s32.totalorder %s14, 7
      %s166 = scalar_select %p165, %s14, 7
      %s167 = smul.addr %s166, 4
      %s168 = scalar_lea.vmem %s3, %s167
      %v170 = vld [vmem:[%s164] ss:$3 sm:$0x7]
      %v171 = vpack.c.bf16 %v170, %v170
      %v172 = vld [vmem:[%s1] sm:$0xf]
      %v173 = vld [vmem:[%s1 + $0x4] sm:$0xf]
      %v174 = vld [vmem:[%s1 + $0x8] sm:$0xf]
      %v175 = vld [vmem:[%s1 + $0xc] sm:$0xf]
      %s176 = scalar_lea.vmem %s164, 1
      %v177 = vld [vmem:[%s176] ss:$3 sm:$0x7]
      %v178 = vpack.c.bf16 %v177, %v177
      %s179 = scalar_lea.vmem %s1, 16
      %v180 = vld [vmem:[%s179] sm:$0xf]
      %v181 = vld [vmem:[%s179 + $0x4] sm:$0xf]
      %v182 = vld [vmem:[%s179 + $0x8] sm:$0xf]
      %v183 = vld [vmem:[%s179 + $0xc] sm:$0xf]
      %v188 = vunpack.c.l.b16 %v180
      %v189 = vunpack.c.l.b16 %v181
      %v190 = vunpack.c.l.b16 %v182
      %v191 = vunpack.c.l.b16 %v183
      %v192 = vpack.c.b16 %v189, %v188
      %v193 = vpack.c.b16 %v191, %v190
      %vm196 = vcmask 261120
      %v198 = vsel %vm196, %v178, 0
      %200 = vmatprep.subr.bf16.mxu0 0
      %201 = vmatpush1.bf16.msra.mxu0 0
      %202 = vmatprep.subr.bf16.mxu0 0
      %203 = vmatpush1.bf16.msra.mxu0 0
      %204 = vmatprep.subr.bf16.mxu0 0
      %205 = vmatpush1.bf16.msra.mxu0 0
      %206 = vmatprep.subr.bf16.mxu0 0
      %207 = vmatpush1.bf16.msra.mxu0 0
      %208 = vmatprep.subr.bf16.mxu0 0
      %209 = vmatpush1.bf16.msra.mxu0 0
      %210 = vmatprep.subr.bf16.mxu0 0
      %211 = vmatpush1.bf16.msra.mxu0 0
      %212 = vmatprep.subr.bf16.mxu0 0
      %213 = vmatpush1.bf16.msra.mxu0 %v193
      %214 = vmatprep.subr.bf16.mxu0 0
      %215 = vmatpush1.bf16.msra.mxu0 %v192
      %216 = vmatprep.subr.bf16.mxu0 0
      %217 = vmatpush2.bf16.msra.mxu0 0
      %218 = vmatprep.subr.bf16.mxu0 0
      %219 = vmatpush2.bf16.msra.mxu0 0
      %220 = vmatprep.subr.bf16.mxu0 0
      %221 = vmatpush2.bf16.msra.mxu0 0
      %222 = vmatprep.subr.bf16.mxu0 0
      %223 = vmatpush2.bf16.msra.mxu0 0
      %224 = vmatprep.subr.bf16.mxu0 0
      %225 = vmatpush2.bf16.msra.mxu0 0
      %226 = vmatprep.subr.bf16.mxu0 0
      %227 = vmatpush2.bf16.msra.mxu0 0
      %228 = vmatprep.subr.bf16.mxu0 0
      %229 = vmatpush2.bf16.msra.mxu0 0
      %230 = vmatprep.subr.bf16.mxu0 0
      %231 = vmatpush2.bf16.msra.mxu0 0
      %232 = vmatprep.mubr.bf16.mxu0 0
      %233 = vmatmul.mubr.bf16.gmra.mxu0 %v198
      %v234 = vpop.f32.mrf.mxu0
      %v235 = vadd.f32 0.0, %v234
      %v236 = vpop.f32.mrf.mxu0
      %v237 = vpop.f32.mrf.mxu0
      %v238 = vpop.f32.mrf.mxu0
      %239 = vdwg.mxu0
      %v244 = vunpack.c.l.b16 %v172
      %v245 = vunpack.c.l.b16 %v173
      %v246 = vunpack.c.l.b16 %v174
      %v247 = vunpack.c.l.b16 %v175
      %v248 = vpack.c.b16 %v245, %v244
      %v249 = vpack.c.b16 %v247, %v246
      %v253 = vsel %vm196, %v171, 0
      %255 = vmatprep.subr.bf16.mxu0 0
      %256 = vmatpush1.bf16.msra.mxu0 0
      %257 = vmatprep.subr.bf16.mxu0 0
      %258 = vmatpush1.bf16.msra.mxu0 0
      %259 = vmatprep.subr.bf16.mxu0 0
      %260 = vmatpush1.bf16.msra.mxu0 0
      %261 = vmatprep.subr.bf16.mxu0 0
      %262 = vmatpush1.bf16.msra.mxu0 0
      %263 = vmatprep.subr.bf16.mxu0 0
      %264 = vmatpush1.bf16.msra.mxu0 0
      %265 = vmatprep.subr.bf16.mxu0 0
      %266 = vmatpush1.bf16.msra.mxu0 0
      %267 = vmatprep.subr.bf16.mxu0 0
      %268 = vmatpush1.bf16.msra.mxu0 %v249
      %269 = vmatprep.subr.bf16.mxu0 0
      %270 = vmatpush1.bf16.msra.mxu0 %v248
      %271 = vmatprep.subr.bf16.mxu0 0
      %272 = vmatpush2.bf16.msra.mxu0 0
      %273 = vmatprep.subr.bf16.mxu0 0
      %274 = vmatpush2.bf16.msra.mxu0 0
      %275 = vmatprep.subr.bf16.mxu0 0
      %276 = vmatpush2.bf16.msra.mxu0 0
      %277 = vmatprep.subr.bf16.mxu0 0
      %278 = vmatpush2.bf16.msra.mxu0 0
      %279 = vmatprep.subr.bf16.mxu0 0
      %280 = vmatpush2.bf16.msra.mxu0 0
      %281 = vmatprep.subr.bf16.mxu0 0
      %282 = vmatpush2.bf16.msra.mxu0 0
      %283 = vmatprep.subr.bf16.mxu0 0
      %284 = vmatpush2.bf16.msra.mxu0 0
      %285 = vmatprep.subr.bf16.mxu0 0
      %286 = vmatpush2.bf16.msra.mxu0 0
      %287 = vmatprep.mubr.bf16.mxu0 0
      %288 = vmatmul.mubr.bf16.gmra.mxu0 %v253
      %v289 = vpop.f32.mrf.mxu0
      %v290 = vadd.f32 %v235, %v289
      %v291 = vpop.f32.mrf.mxu0
      %v292 = vpop.f32.mrf.mxu0
      %v293 = vpop.f32.mrf.mxu0
      %294 = vdwg.mxu0
      %s295 = scalar_lea.vmem %s164, 2
      %v296 = vld [vmem:[%s295] ss:$3 sm:$0x7]
      %v297 = vpack.c.bf16 %v296, %v296
      %s298 = scalar_lea.vmem %s1, 32
      %v299 = vld [vmem:[%s298] sm:$0xf]
      %v300 = vld [vmem:[%s298 + $0x4] sm:$0xf]
      %v301 = vld [vmem:[%s298 + $0x8] sm:$0xf]
      %v302 = vld [vmem:[%s298 + $0xc] sm:$0xf]
      %v307 = vunpack.c.l.b16 %v299
      %v308 = vunpack.c.l.b16 %v300
      %v309 = vunpack.c.l.b16 %v301
      %v310 = vunpack.c.l.b16 %v302
      %v311 = vpack.c.b16 %v308, %v307
      %v312 = vpack.c.b16 %v310, %v309
      %v316 = vsel %vm196, %v297, 0
      %318 = vmatprep.subr.bf16.mxu0 0
      %319 = vmatpush1.bf16.msra.mxu0 0
      %320 = vmatprep.subr.bf16.mxu0 0
      %321 = vmatpush1.bf16.msra.mxu0 0
      %322 = vmatprep.subr.bf16.mxu0 0
      %323 = vmatpush1.bf16.msra.mxu0 0
      %324 = vmatprep.subr.bf16.mxu0 0
      %325 = vmatpush1.bf16.msra.mxu0 0
      %326 = vmatprep.subr.bf16.mxu0 0
      %327 = vmatpush1.bf16.msra.mxu0 0
      %328 = vmatprep.subr.bf16.mxu0 0
      %329 = vmatpush1.bf16.msra.mxu0 0
      %330 = vmatprep.subr.bf16.mxu0 0
      %331 = vmatpush1.bf16.msra.mxu0 %v312
      %332 = vmatprep.subr.bf16.mxu0 0
      %333 = vmatpush1.bf16.msra.mxu0 %v311
      %334 = vmatprep.subr.bf16.mxu0 0
      %335 = vmatpush2.bf16.msra.mxu0 0
      %336 = vmatprep.subr.bf16.mxu0 0
      %337 = vmatpush2.bf16.msra.mxu0 0
      %338 = vmatprep.subr.bf16.mxu0 0
      %339 = vmatpush2.bf16.msra.mxu0 0
      %340 = vmatprep.subr.bf16.mxu0 0
      %341 = vmatpush2.bf16.msra.mxu0 0
      %342 = vmatprep.subr.bf16.mxu0 0
      %343 = vmatpush2.bf16.msra.mxu0 0
      %344 = vmatprep.subr.bf16.mxu0 0
      %345 = vmatpush2.bf16.msra.mxu0 0
      %346 = vmatprep.subr.bf16.mxu0 0
      %347 = vmatpush2.bf16.msra.mxu0 0
      %348 = vmatprep.subr.bf16.mxu0 0
      %349 = vmatpush2.bf16.msra.mxu0 0
      %350 = vmatprep.mubr.bf16.mxu0 0
      %351 = vmatmul.mubr.bf16.gmra.mxu0 %v316
      %v352 = vpop.f32.mrf.mxu0
      %v353 = vadd.f32 0.0, %v352
      %v354 = vpop.f32.mrf.mxu0
      %v355 = vpop.f32.mrf.mxu0
      %v356 = vpop.f32.mrf.mxu0
      %357 = vdwg.mxu0
      %v358 = vadd.f32 %v290, %v353
      %s359 = scalar_lea.vmem %s164, 3
      %v360 = vld [vmem:[%s359] ss:$3 sm:$0x7]
      %v361 = vpack.c.bf16 %v360, %v360
      %s362 = scalar_lea.vmem %s1, 48
      %v363 = vld [vmem:[%s362] sm:$0xf]
      %v364 = vld [vmem:[%s362 + $0x4] sm:$0xf]
      %v365 = vld [vmem:[%s362 + $0x8] sm:$0xf]
      %v366 = vld [vmem:[%s362 + $0xc] sm:$0xf]
      %v371 = vunpack.c.l.b16 %v363
      %v372 = vunpack.c.l.b16 %v364
      %v373 = vunpack.c.l.b16 %v365
      %v374 = vunpack.c.l.b16 %v366
      %v375 = vpack.c.b16 %v372, %v371
      %v376 = vpack.c.b16 %v374, %v373
      %v380 = vsel %vm196, %v361, 0
      %382 = vmatprep.subr.bf16.mxu0 0
      %383 = vmatpush1.bf16.msra.mxu0 0
      %384 = vmatprep.subr.bf16.mxu0 0
      %385 = vmatpush1.bf16.msra.mxu0 0
      %386 = vmatprep.subr.bf16.mxu0 0
      %387 = vmatpush1.bf16.msra.mxu0 0
      %388 = vmatprep.subr.bf16.mxu0 0
      %389 = vmatpush1.bf16.msra.mxu0 0
      %390 = vmatprep.subr.bf16.mxu0 0
      %391 = vmatpush1.bf16.msra.mxu0 0
      %392 = vmatprep.subr.bf16.mxu0 0
      %393 = vmatpush1.bf16.msra.mxu0 0
      %394 = vmatprep.subr.bf16.mxu0 0
      %395 = vmatpush1.bf16.msra.mxu0 %v376
      %396 = vmatprep.subr.bf16.mxu0 0
      %397 = vmatpush1.bf16.msra.mxu0 %v375
      %398 = vmatprep.subr.bf16.mxu0 0
      %399 = vmatpush2.bf16.msra.mxu0 0
      %400 = vmatprep.subr.bf16.mxu0 0
      %401 = vmatpush2.bf16.msra.mxu0 0
      %402 = vmatprep.subr.bf16.mxu0 0
      %403 = vmatpush2.bf16.msra.mxu0 0
      %404 = vmatprep.subr.bf16.mxu0 0
      %405 = vmatpush2.bf16.msra.mxu0 0
      %406 = vmatprep.subr.bf16.mxu0 0
      %407 = vmatpush2.bf16.msra.mxu0 0
      %408 = vmatprep.subr.bf16.mxu0 0
      %409 = vmatpush2.bf16.msra.mxu0 0
      %410 = vmatprep.subr.bf16.mxu0 0
      %411 = vmatpush2.bf16.msra.mxu0 0
      %412 = vmatprep.subr.bf16.mxu0 0
      %413 = vmatpush2.bf16.msra.mxu0 0
      %414 = vmatprep.mubr.bf16.mxu0 0
      %415 = vmatmul.mubr.bf16.gmra.mxu0 %v380
      %v416 = vpop.f32.mrf.mxu0
      %v417 = vadd.f32 0.0, %v416
      %v418 = vpop.f32.mrf.mxu0
      %v419 = vpop.f32.mrf.mxu0
      %v420 = vpop.f32.mrf.mxu0
      %421 = vdwg.mxu0
      %v422 = vadd.f32 %v358, %v417
      %s423 = scalar_lea.vmem %s164, 4
      %v424 = vld [vmem:[%s423] ss:$3 sm:$0x7]
      %v425 = vpack.c.bf16 %v424, %v424
      %s426 = scalar_lea.vmem %s1, 64
      %v427 = vld [vmem:[%s426] sm:$0xf]
      %v428 = vld [vmem:[%s426 + $0x4] sm:$0xf]
      %v429 = vld [vmem:[%s426 + $0x8] sm:$0xf]
      %v430 = vld [vmem:[%s426 + $0xc] sm:$0xf]
      %v435 = vunpack.c.l.b16 %v427
      %v436 = vunpack.c.l.b16 %v428
      %v437 = vunpack.c.l.b16 %v429
      %v438 = vunpack.c.l.b16 %v430
      %v439 = vpack.c.b16 %v436, %v435
      %v440 = vpack.c.b16 %v438, %v437
      %v444 = vsel %vm196, %v425, 0
      %446 = vmatprep.subr.bf16.mxu0 0
      %447 = vmatpush1.bf16.msra.mxu0 0
      %448 = vmatprep.subr.bf16.mxu0 0
      %449 = vmatpush1.bf16.msra.mxu0 0
      %450 = vmatprep.subr.bf16.mxu0 0
      %451 = vmatpush1.bf16.msra.mxu0 0
      %452 = vmatprep.subr.bf16.mxu0 0
      %453 = vmatpush1.bf16.msra.mxu0 0
      %454 = vmatprep.subr.bf16.mxu0 0
      %455 = vmatpush1.bf16.msra.mxu0 0
      %456 = vmatprep.subr.bf16.mxu0 0
      %457 = vmatpush1.bf16.msra.mxu0 0
      %458 = vmatprep.subr.bf16.mxu0 0
      %459 = vmatpush1.bf16.msra.mxu0 %v440
      %460 = vmatprep.subr.bf16.mxu0 0
      %461 = vmatpush1.bf16.msra.mxu0 %v439
      %462 = vmatprep.subr.bf16.mxu0 0
      %463 = vmatpush2.bf16.msra.mxu0 0
      %464 = vmatprep.subr.bf16.mxu0 0
      %465 = vmatpush2.bf16.msra.mxu0 0
      %466 = vmatprep.subr.bf16.mxu0 0
      %467 = vmatpush2.bf16.msra.mxu0 0
      %468 = vmatprep.subr.bf16.mxu0 0
      %469 = vmatpush2.bf16.msra.mxu0 0
      %470 = vmatprep.subr.bf16.mxu0 0
      %471 = vmatpush2.bf16.msra.mxu0 0
      %472 = vmatprep.subr.bf16.mxu0 0
      %473 = vmatpush2.bf16.msra.mxu0 0
      %474 = vmatprep.subr.bf16.mxu0 0
      %475 = vmatpush2.bf16.msra.mxu0 0
      %476 = vmatprep.subr.bf16.mxu0 0
      %477 = vmatpush2.bf16.msra.mxu0 0
      %478 = vmatprep.mubr.bf16.mxu0 0
      %479 = vmatmul.mubr.bf16.gmra.mxu0 %v444
      %v480 = vpop.f32.mrf.mxu0
      %v481 = vadd.f32 0.0, %v480
      %v482 = vpop.f32.mrf.mxu0
      %v483 = vpop.f32.mrf.mxu0
      %v484 = vpop.f32.mrf.mxu0
      %485 = vdwg.mxu0
      %v486 = vadd.f32 %v422, %v481
      %v487 = vld [vmem:[%s2] sm:$0x1]
      %v489 = vlaneseq
      %v490 = vshrl.u32 %v489, 7
      %v491 = vsub.s32 0, %v490
      %v492 = vrot.slane %v487, %v491
      %v494 = vadd.f32 %v486, %v492
      %vm495 = vcmp.gt.f32.partialorder %v494, 0.0
      %v496 = vmul.f32 %v494, 0.01
      %v497 = vsel %vm495, %v494, %v496
      %vm498 = vcmask 518144
      %499 = vst.msk [vmem:[%s168] sm:$0x7] %vm498, %v497
      %p500 = scmp.lt.s32.totalorder %s14, 7
      %s501 = scalar_select %p500, %s14, 7
      %s502 = smul.addr %s501, 4
      %s503 = scalar_lea.vmem %s3, %s502
      // Predicated region
      $region33: #{sub_discriminator_mpd_forward.4} parent=31 // pred_check
        %p504 = pneg %p100
      $region34: #{sub_discriminator_mpd_forward.4} parent=31 // pred_check_branch
        %506 = sbr.rel (%p504) target = $region36
      $region35: #{sub_discriminator_mpd_forward.4} parent=31 // pred_region
        _
      $region36: #{sub_discriminator_mpd_forward.4} parent=31 // pred_fallthru
        _
    $region32: #{sub_discriminator_mpd_forward.4} parent=5 // pred_fallthru
      _
    %p507 = scmp.le.s32.totalorder 2, %s9
    // Predicated region
    $region37: #{sub_discriminator_mpd_forward.4} parent=5 // pred_check
      %p508 = pneg %p507
    $region38: #{sub_discriminator_mpd_forward.4} parent=5 // pred_check_branch
      %510 = sbr.rel (%p508) target = $region40
    $region39: #{sub_discriminator_mpd_forward.4} parent=5 // pred_region
      %s511 = ssub.s32 %s9, 2
      // Predicated region
      $region41: #{sub_discriminator_mpd_forward.4} parent=39 // pred_check
        %p512 = pneg %p106
      $region42: #{sub_discriminator_mpd_forward.4} parent=39 // pred_check_branch
        %514 = sbr.rel (%p512) target = $region44
      $region43: #{sub_discriminator_mpd_forward.4} parent=39 // pred_region
        %p515 = scmp.lt.s32.totalorder %s15, 7
        %s516 = scalar_select %p515, %s15, 7
        %s517 = smul.addr %s516, 4
        %s518 = scalar_lea.vmem %s3, %s517
      $region44: #{sub_discriminator_mpd_forward.4} parent=39 // pred_fallthru
        _
    $region40: #{sub_discriminator_mpd_forward.4} parent=5 // pred_fallthru
      _
  $region6: #{sub_discriminator_mpd_forward.4} parent=0 // loop_footer
    %s13 = sadd.s32 1, %s9
  $region7: #{sub_discriminator_mpd_forward.4} parent=0 // loop_footer_branch
    %8 = sbr.rel target = $region3
  $region8: #{sub_discriminator_mpd_forward.4} parent=0 // loop_exit
    _

// kernel: sub_discriminator_mpd_forward.5
$region0: #{sub_discriminator_mpd_forward.5}
  #allocation0 [shape = 'u32[]', space=smem, size = 0x4, offset = 0x4, fixed_abs, tag = 'smem constant byte address 0x4 - core index']
  #allocation1 [shape = 'u32[144,128]{1,0:T(1,128)}', space=vmem, size = 0x12000, scoped, tag = 'internal scratch']
  #allocation2 [shape = 'f32[5,64]{1,0:T(8,128)}', space=vmem, size = 0x1000, scoped, tag = 'scratch operand']
  #allocation3 [shape = 'f32[1,1]{1,0:T(1,128)S(1)}', space=vmem, size = 0x200, scoped, tag = 'scoped memory for sub_discriminator_mpd_forward.5']
  %s0 = inlined_call_operand.vmem [shape: f32[8,7,64], index: 0, kind: input, shape index: {}]
  %s1 = inlined_call_operand.vmem [shape: bf16[5,64,64], index: 1, kind: input, shape index: {}]
  %s2 = inlined_call_operand.vmem [shape: f32[1,64], index: 2, kind: input, shape index: {}]
  %s3 = inlined_call_operand.vmem [shape: f32[3,64,1], index: 3, kind: input, shape index: {}]
  %s4 = inlined_call_operand.<no memory space> [shape: f32[1,1], index: 4, kind: input, shape index: {}]
  %s5 = inlined_call_operand.vmem [shape: f32[8,3,1], index: 5, kind: output, shape index: {}]
  %s6 = sld [smem:[#allocation0]]
  $region53: #{sub_discriminator_mpd_forward.5} parent=0
    _
  %s8 = ssub.s32 1, %s6
  %s9 = scalar_select 0, %s8, %s6
  %v10 = vstv %s4
  %11 = vst [vmem:[#allocation3] sm:$0x1] %v10
  loop: start=0, step=1, limit=10
  $region2: #{sub_discriminator_mpd_forward.5} parent=0 // loop_pre_header
    _
  $region3: #{sub_discriminator_mpd_forward.5} parent=0 // loop_header
    %s13 = sphi 0, %s17
    %p14 = scmp.ge.s32.totalorder %s13, 10
    %s23 = sphi 0, %s25
    %s26 = sphi 0, %s23
    %s27 = sphi 0, %s26
    %s43 = sphi 0, %s27
    %s47 = sphi 0, %s47
    %s49 = sphi 0, %s47
    %s50 = sphi 0, %s49
    %s64 = sphi 0, %s50
    %s68 = sphi 0, %s68
    %s70 = sphi 0, %s68
    %s71 = sphi 0, %s70
    %s85 = sphi 0, %s71
    %s89 = sphi 0, %s89
    %s91 = sphi 0, %s89
    %s92 = sphi 0, %s91
    %s106 = sphi 0, %s92
    %s110 = sphi 0, %s110
    %s112 = sphi 0, %s110
    %s113 = sphi 0, %s112
    %s127 = sphi 0, %s113
    %s133 = sphi 0, %s135
    %s136 = sphi 0, %s133
    %s137 = sphi 0, %s136
    %s153 = sphi 0, %s137
  $region4: #{sub_discriminator_mpd_forward.5} parent=0 // loop_header_branch
    %16 = sbr.rel (%p14) target = $region8
  $region5: #{sub_discriminator_mpd_forward.5} parent=0 // loop_body
    %s18 = ssub.s32 %s13, 1
    %s19 = ssub.s32 %s13, 2
    %s20 = sadd.s32 %s13, 1
    %s21 = ssub.s32 %s13, %s20
    %p22 = scmp.eq.s32.totalorder %s21, 0
    %s24 = sadd.s32 %s23, 1
    %s25 = scalar_select %p22, %s23, %s24
    %p28 = pneg %p22
    %p29 = scmp.eq.s32.totalorder %s13, 7
    %p30 = por %p28, %p29
    %p31 = scmp.ne.s32.totalorder %s23, %s26
    %p32 = scmp.eq.s32.totalorder %s13, 0
    %p33 = por %p31, %p32
    %p34 = scmp.ne.s32.totalorder %s23, %s26
    %p35 = scmp.eq.s32.totalorder %s18, 7
    %p36 = por %p34, %p35
    %p37 = scmp.ne.s32.totalorder %s26, %s27
    %p38 = scmp.eq.s32.totalorder %s18, 0
    %p39 = por %p37, %p38
    %p40 = scmp.ne.s32.totalorder %s26, %s27
    %p41 = scmp.eq.s32.totalorder %s19, 7
    %p42 = por %p40, %p41
    %p44 = scmp.ne.s32.totalorder %s27, %s43
    %p45 = scmp.eq.s32.totalorder %s19, 0
    %p46 = por %p44, %p45
    %s48 = sadd.s32 %s47, 1
    %p51 = scmp.eq.s32.totalorder %s13, 7
    %p52 = scmp.ne.s32.totalorder %s47, %s49
    %p53 = scmp.eq.s32.totalorder %s13, 0
    %p54 = por %p52, %p53
    %p55 = scmp.ne.s32.totalorder %s47, %s49
    %p56 = scmp.eq.s32.totalorder %s18, 7
    %p57 = por %p55, %p56
    %p58 = scmp.ne.s32.totalorder %s49, %s50
    %p59 = scmp.eq.s32.totalorder %s18, 0
    %p60 = por %p58, %p59
    %p61 = scmp.ne.s32.totalorder %s49, %s50
    %p62 = scmp.eq.s32.totalorder %s19, 7
    %p63 = por %p61, %p62
    %p65 = scmp.ne.s32.totalorder %s50, %s64
    %p66 = scmp.eq.s32.totalorder %s19, 0
    %p67 = por %p65, %p66
    %s69 = sadd.s32 %s68, 1
    %p72 = scmp.eq.s32.totalorder %s13, 7
    %p73 = scmp.ne.s32.totalorder %s68, %s70
    %p74 = scmp.eq.s32.totalorder %s13, 0
    %p75 = por %p73, %p74
    %p76 = scmp.ne.s32.totalorder %s68, %s70
    %p77 = scmp.eq.s32.totalorder %s18, 7
    %p78 = por %p76, %p77
    %p79 = scmp.ne.s32.totalorder %s70, %s71
    %p80 = scmp.eq.s32.totalorder %s18, 0
    %p81 = por %p79, %p80
    %p82 = scmp.ne.s32.totalorder %s70, %s71
    %p83 = scmp.eq.s32.totalorder %s19, 7
    %p84 = por %p82, %p83
    %p86 = scmp.ne.s32.totalorder %s71, %s85
    %p87 = scmp.eq.s32.totalorder %s19, 0
    %p88 = por %p86, %p87
    %s90 = sadd.s32 %s89, 1
    %p93 = scmp.eq.s32.totalorder %s13, 7
    %p94 = scmp.ne.s32.totalorder %s89, %s91
    %p95 = scmp.eq.s32.totalorder %s13, 0
    %p96 = por %p94, %p95
    %p97 = scmp.ne.s32.totalorder %s89, %s91
    %p98 = scmp.eq.s32.totalorder %s18, 7
    %p99 = por %p97, %p98
    %p100 = scmp.ne.s32.totalorder %s91, %s92
    %p101 = scmp.eq.s32.totalorder %s18, 0
    %p102 = por %p100, %p101
    %p103 = scmp.ne.s32.totalorder %s91, %s92
    %p104 = scmp.eq.s32.totalorder %s19, 7
    %p105 = por %p103, %p104
    %p107 = scmp.ne.s32.totalorder %s92, %s106
    %p108 = scmp.eq.s32.totalorder %s19, 0
    %p109 = por %p107, %p108
    %s111 = sadd.s32 %s110, 1
    %p114 = scmp.eq.s32.totalorder %s13, 7
    %p115 = scmp.ne.s32.totalorder %s110, %s112
    %p116 = scmp.eq.s32.totalorder %s13, 0
    %p117 = por %p115, %p116
    %p118 = scmp.ne.s32.totalorder %s110, %s112
    %p119 = scmp.eq.s32.totalorder %s18, 7
    %p120 = por %p118, %p119
    %p121 = scmp.ne.s32.totalorder %s112, %s113
    %p122 = scmp.eq.s32.totalorder %s18, 0
    %p123 = por %p121, %p122
    %p124 = scmp.ne.s32.totalorder %s112, %s113
    %p125 = scmp.eq.s32.totalorder %s19, 7
    %p126 = por %p124, %p125
    %p128 = scmp.ne.s32.totalorder %s113, %s127
    %p129 = scmp.eq.s32.totalorder %s19, 0
    %p130 = por %p128, %p129
    %s131 = ssub.s32 %s13, %s20
    %p132 = scmp.eq.s32.totalorder %s131, 0
    %s134 = sadd.s32 %s133, 1
    %s135 = scalar_select %p132, %s133, %s134
    %p138 = pneg %p132
    %p139 = scmp.eq.s32.totalorder %s13, 7
    %p140 = por %p138, %p139
    %p141 = scmp.ne.s32.totalorder %s133, %s136
    %p142 = scmp.eq.s32.totalorder %s13, 0
    %p143 = por %p141, %p142
    %p144 = scmp.ne.s32.totalorder %s133, %s136
    %p145 = scmp.eq.s32.totalorder %s18, 7
    %p146 = por %p144, %p145
    %p147 = scmp.ne.s32.totalorder %s136, %s137
    %p148 = scmp.eq.s32.totalorder %s18, 0
    %p149 = por %p147, %p148
    %p150 = scmp.ne.s32.totalorder %s136, %s137
    %p151 = scmp.eq.s32.totalorder %s19, 7
    %p152 = por %p150, %p151
    %p154 = scmp.ne.s32.totalorder %s137, %s153
    %p155 = scmp.eq.s32.totalorder %s19, 0
    %p156 = por %p154, %p155
    %p157 = scmp.le.s32.totalorder 1, %s13
    %p158 = scmp.lt.s32.totalorder %s13, 9
    %p159 = pnand %p157, %p158
    %p160 = pneg %p159
    // Predicated region
    $region9: #{sub_discriminator_mpd_forward.5} parent=5 // pred_check
      _
    $region10: #{sub_discriminator_mpd_forward.5} parent=5 // pred_check_branch
      %162 = sbr.rel (%p159) target = $region12
    $region11: #{sub_discriminator_mpd_forward.5} parent=5 // pred_region
      %s163 = ssub.s32 %s13, 1
      // Predicated region
      $region13: #{sub_discriminator_mpd_forward.5} parent=11 // pred_check
        %p164 = pneg %p60
      $region14: #{sub_discriminator_mpd_forward.5} parent=11 // pred_check_branch
        %166 = sbr.rel (%p164) target = $region16
      $region15: #{sub_discriminator_mpd_forward.5} parent=11 // pred_region
        _
      $region16: #{sub_discriminator_mpd_forward.5} parent=11 // pred_fallthru
        _
      // Predicated region
      $region17: #{sub_discriminator_mpd_forward.5} parent=11 // pred_check
        %p167 = pneg %p81
      $region18: #{sub_discriminator_mpd_forward.5} parent=11 // pred_check_branch
        %169 = sbr.rel (%p167) target = $region20
      $region19: #{sub_discriminator_mpd_forward.5} parent=11 // pred_region
        _
      $region20: #{sub_discriminator_mpd_forward.5} parent=11 // pred_fallthru
        _
      // Predicated region
      $region21: #{sub_discriminator_mpd_forward.5} parent=11 // pred_check
        %p170 = pneg %p102
      $region22: #{sub_discriminator_mpd_forward.5} parent=11 // pred_check_branch
        %172 = sbr.rel (%p170) target = $region24
      $region23: #{sub_discriminator_mpd_forward.5} parent=11 // pred_region
        _
      $region24: #{sub_discriminator_mpd_forward.5} parent=11 // pred_fallthru
        _
      // Predicated region
      $region25: #{sub_discriminator_mpd_forward.5} parent=11 // pred_check
        %p173 = pneg %p123
      $region26: #{sub_discriminator_mpd_forward.5} parent=11 // pred_check_branch
        %175 = sbr.rel (%p173) target = $region28
      $region27: #{sub_discriminator_mpd_forward.5} parent=11 // pred_region
        _
      $region28: #{sub_discriminator_mpd_forward.5} parent=11 // pred_fallthru
        _
    $region12: #{sub_discriminator_mpd_forward.5} parent=5 // pred_fallthru
      _
    %p176 = scmp.lt.s32.totalorder %s13, 8
    // Predicated region
    $region29: #{sub_discriminator_mpd_forward.5} parent=5 // pred_check
      %p177 = pneg %p176
    $region30: #{sub_discriminator_mpd_forward.5} parent=5 // pred_check_branch
      %179 = sbr.rel (%p177) target = $region32
    $region31: #{sub_discriminator_mpd_forward.5} parent=5 // pred_region
      // Predicated region
      $region33: #{sub_discriminator_mpd_forward.5} parent=31 // pred_check
        %p180 = pneg %p33
      $region34: #{sub_discriminator_mpd_forward.5} parent=31 // pred_check_branch
        %182 = sbr.rel (%p180) target = $region36
      $region35: #{sub_discriminator_mpd_forward.5} parent=31 // pred_region
        %p183 = scmp.lt.s32.totalorder %s13, 7
        %s184 = scalar_select %p183, %s13, 7
        %s185 = smul.addr %s184, 8
        %s186 = scalar_lea.vmem %s0, %s185
      $region36: #{sub_discriminator_mpd_forward.5} parent=31 // pred_fallthru
        _
    $region32: #{sub_discriminator_mpd_forward.5} parent=5 // pred_fallthru
      _
    %p187 = scmp.le.s32.totalorder 1, %s13
    %p188 = scmp.lt.s32.totalorder %s13, 9
    %p189 = pnand %p187, %p188
    %p190 = pneg %p189
    // Predicated region
    $region37: #{sub_discriminator_mpd_forward.5} parent=5 // pred_check
      _
    $region38: #{sub_discriminator_mpd_forward.5} parent=5 // pred_check_branch
      %192 = sbr.rel (%p189) target = $region40
    $region39: #{sub_discriminator_mpd_forward.5} parent=5 // pred_region
      %s193 = ssub.s32 %s13, 1
      %p194 = scmp.lt.s32.totalorder %s18, 7
      %s195 = scalar_select %p194, %s18, 7
      %s196 = smul.addr %s195, 8
      %s197 = scalar_lea.vmem %s0, %s196
      %p198 = pneg %p39
      %p199 = pneg %p36
      %p200 = pneg %p60
      %p201 = pneg %p57
      %p202 = pneg %p81
      %p203 = pneg %p78
      %p204 = pneg %p102
      %p205 = pneg %p99
      %p206 = pneg %p123
      %p207 = pneg %p120
      %p208 = pneg %p149
      %p209 = pneg %p146
      %p210 = scmp.lt.s32.totalorder %s18, 7
      %s211 = scalar_select %p210, %s18, 7
      %s212 = smul.addr %s211, 4
      %s213 = scalar_lea.vmem %s5, %s212
      %p214 = scmp.lt.s32.totalorder %s18, 7
      %s215 = scalar_select %p214, %s18, 7
      %s216 = smul.addr %s215, 8
      %s217 = scalar_lea.vmem %s0, %s216
      %p218 = scmp.lt.s32.totalorder %s18, 7
      %s219 = scalar_select %p218, %s18, 7
      %s220 = smul.addr %s219, 4
      %s221 = scalar_lea.vmem %s5, %s220
      %v223 = vld [vmem:[%s217] sm:$0x7]
      %v224 = vpack.c.bf16 %v223, %v223
      %v225 = vld [vmem:[%s1] sm:$0xf]
      %v226 = vld [vmem:[%s1 + $0x4] sm:$0xf]
      %v227 = vld [vmem:[%s1 + $0x8] sm:$0xf]
      %v228 = vld [vmem:[%s1 + $0xc] sm:$0xf]
      %v229 = vld [vmem:[%s1 + $0x10] sm:$0xf]
      %v230 = vld [vmem:[%s1 + $0x14] sm:$0xf]
      %v231 = vld [vmem:[%s1 + $0x18] sm:$0xf]
      %v232 = vld [vmem:[%s1 + $0x1c] sm:$0xf]
      %v233 = vld [vmem:[%s217 + $0x1] sm:$0x7]
      %v234 = vpack.c.bf16 %v233, %v233
      %s235 = scalar_lea.vmem %s1, 32
      %v236 = vld [vmem:[%s235] sm:$0xf]
      %v237 = vld [vmem:[%s235 + $0x4] sm:$0xf]
      %v238 = vld [vmem:[%s235 + $0x8] sm:$0xf]
      %v239 = vld [vmem:[%s235 + $0xc] sm:$0xf]
      %v240 = vld [vmem:[%s235 + $0x10] sm:$0xf]
      %v241 = vld [vmem:[%s235 + $0x14] sm:$0xf]
      %v242 = vld [vmem:[%s235 + $0x18] sm:$0xf]
      %v243 = vld [vmem:[%s235 + $0x1c] sm:$0xf]
      %v252 = vunpack.c.l.b16 %v236
      %v253 = vunpack.c.l.b16 %v237
      %v254 = vunpack.c.l.b16 %v238
      %v255 = vunpack.c.l.b16 %v239
      %v256 = vunpack.c.l.b16 %v240
      %v257 = vunpack.c.l.b16 %v241
      %v258 = vunpack.c.l.b16 %v242
      %v259 = vunpack.c.l.b16 %v243
      %v260 = vpack.c.b16 %v253, %v252
      %v261 = vpack.c.b16 %v255, %v254
      %v262 = vpack.c.b16 %v257, %v256
      %v263 = vpack.c.b16 %v259, %v258
      %vm268 = vcmask 523264
      %v270 = vsel %vm268, %v234, 0
      %272 = vmatprep.subr.bf16.mxu0 0
      %273 = vmatpush1.bf16.msra.mxu0 0
      %274 = vmatprep.subr.bf16.mxu0 0
      %275 = vmatpush1.bf16.msra.mxu0 0
      %276 = vmatprep.subr.bf16.mxu0 0
      %277 = vmatpush1.bf16.msra.mxu0 0
      %278 = vmatprep.subr.bf16.mxu0 0
      %279 = vmatpush1.bf16.msra.mxu0 0
      %280 = vmatprep.subr.bf16.mxu0 0
      %281 = vmatpush1.bf16.msra.mxu0 %v263
      %282 = vmatprep.subr.bf16.mxu0 0
      %283 = vmatpush1.bf16.msra.mxu0 %v262
      %284 = vmatprep.subr.bf16.mxu0 0
      %285 = vmatpush1.bf16.msra.mxu0 %v261
      %286 = vmatprep.subr.bf16.mxu0 0
      %287 = vmatpush1.bf16.msra.mxu0 %v260
      %288 = vmatprep.subr.bf16.mxu0 0
      %289 = vmatpush2.bf16.msra.mxu0 0
      %290 = vmatprep.subr.bf16.mxu0 0
      %291 = vmatpush2.bf16.msra.mxu0 0
      %292 = vmatprep.subr.bf16.mxu0 0
      %293 = vmatpush2.bf16.msra.mxu0 0
      %294 = vmatprep.subr.bf16.mxu0 0
      %295 = vmatpush2.bf16.msra.mxu0 0
      %296 = vmatprep.subr.bf16.mxu0 0
      %297 = vmatpush2.bf16.msra.mxu0 0
      %298 = vmatprep.subr.bf16.mxu0 0
      %299 = vmatpush2.bf16.msra.mxu0 0
      %300 = vmatprep.subr.bf16.mxu0 0
      %301 = vmatpush2.bf16.msra.mxu0 0
      %302 = vmatprep.subr.bf16.mxu0 0
      %303 = vmatpush2.bf16.msra.mxu0 0
      %304 = vmatprep.mubr.bf16.mxu0 0
      %305 = vmatmul.mubr.bf16.gmra.mxu0 %v270
      %v306 = vpop.f32.mrf.mxu0
      %v307 = vadd.f32 0.0, %v306
      %v308 = vpop.f32.mrf.mxu0
      %v309 = vpop.f32.mrf.mxu0
      %v310 = vpop.f32.mrf.mxu0
      %311 = vdwg.mxu0
      %v320 = vunpack.c.l.b16 %v225
      %v321 = vunpack.c.l.b16 %v226
      %v322 = vunpack.c.l.b16 %v227
      %v323 = vunpack.c.l.b16 %v228
      %v324 = vunpack.c.l.b16 %v229
      %v325 = vunpack.c.l.b16 %v230
      %v326 = vunpack.c.l.b16 %v231
      %v327 = vunpack.c.l.b16 %v232
      %v328 = vpack.c.b16 %v321, %v320
      %v329 = vpack.c.b16 %v323, %v322
      %v330 = vpack.c.b16 %v325, %v324
      %v331 = vpack.c.b16 %v327, %v326
      %v337 = vsel %vm268, %v224, 0
      %339 = vmatprep.subr.bf16.mxu0 0
      %340 = vmatpush1.bf16.msra.mxu0 0
      %341 = vmatprep.subr.bf16.mxu0 0
      %342 = vmatpush1.bf16.msra.mxu0 0
      %343 = vmatprep.subr.bf16.mxu0 0
      %344 = vmatpush1.bf16.msra.mxu0 0
      %345 = vmatprep.subr.bf16.mxu0 0
      %346 = vmatpush1.bf16.msra.mxu0 0
      %347 = vmatprep.subr.bf16.mxu0 0
      %348 = vmatpush1.bf16.msra.mxu0 %v331
      %349 = vmatprep.subr.bf16.mxu0 0
      %350 = vmatpush1.bf16.msra.mxu0 %v330
      %351 = vmatprep.subr.bf16.mxu0 0
      %352 = vmatpush1.bf16.msra.mxu0 %v329
      %353 = vmatprep.subr.bf16.mxu0 0
      %354 = vmatpush1.bf16.msra.mxu0 %v328
      %355 = vmatprep.subr.bf16.mxu0 0
      %356 = vmatpush2.bf16.msra.mxu0 0
      %357 = vmatprep.subr.bf16.mxu0 0
      %358 = vmatpush2.bf16.msra.mxu0 0
      %359 = vmatprep.subr.bf16.mxu0 0
      %360 = vmatpush2.bf16.msra.mxu0 0
      %361 = vmatprep.subr.bf16.mxu0 0
      %362 = vmatpush2.bf16.msra.mxu0 0
      %363 = vmatprep.subr.bf16.mxu0 0
      %364 = vmatpush2.bf16.msra.mxu0 0
      %365 = vmatprep.subr.bf16.mxu0 0
      %366 = vmatpush2.bf16.msra.mxu0 0
      %367 = vmatprep.subr.bf16.mxu0 0
      %368 = vmatpush2.bf16.msra.mxu0 0
      %369 = vmatprep.subr.bf16.mxu0 0
      %370 = vmatpush2.bf16.msra.mxu0 0
      %371 = vmatprep.mubr.bf16.mxu0 0
      %372 = vmatmul.mubr.bf16.gmra.mxu0 %v337
      %v373 = vpop.f32.mrf.mxu0
      %v374 = vadd.f32 %v307, %v373
      %v375 = vpop.f32.mrf.mxu0
      %v376 = vpop.f32.mrf.mxu0
      %v377 = vpop.f32.mrf.mxu0
      %378 = vdwg.mxu0
      %v379 = vld [vmem:[%s217 + $0x2] sm:$0x7]
      %v380 = vpack.c.bf16 %v379, %v379
      %s381 = scalar_lea.vmem %s1, 64
      %v382 = vld [vmem:[%s381] sm:$0xf]
      %v383 = vld [vmem:[%s381 + $0x4] sm:$0xf]
      %v384 = vld [vmem:[%s381 + $0x8] sm:$0xf]
      %v385 = vld [vmem:[%s381 + $0xc] sm:$0xf]
      %v386 = vld [vmem:[%s381 + $0x10] sm:$0xf]
      %v387 = vld [vmem:[%s381 + $0x14] sm:$0xf]
      %v388 = vld [vmem:[%s381 + $0x18] sm:$0xf]
      %v389 = vld [vmem:[%s381 + $0x1c] sm:$0xf]
      %v398 = vunpack.c.l.b16 %v382
      %v399 = vunpack.c.l.b16 %v383
      %v400 = vunpack.c.l.b16 %v384
      %v401 = vunpack.c.l.b16 %v385
      %v402 = vunpack.c.l.b16 %v386
      %v403 = vunpack.c.l.b16 %v387
      %v404 = vunpack.c.l.b16 %v388
      %v405 = vunpack.c.l.b16 %v389
      %v406 = vpack.c.b16 %v399, %v398
      %v407 = vpack.c.b16 %v401, %v400
      %v408 = vpack.c.b16 %v403, %v402
      %v409 = vpack.c.b16 %v405, %v404
      %v415 = vsel %vm268, %v380, 0
      %417 = vmatprep.subr.bf16.mxu0 0
      %418 = vmatpush1.bf16.msra.mxu0 0
      %419 = vmatprep.subr.bf16.mxu0 0
      %420 = vmatpush1.bf16.msra.mxu0 0
      %421 = vmatprep.subr.bf16.mxu0 0
      %422 = vmatpush1.bf16.msra.mxu0 0
      %423 = vmatprep.subr.bf16.mxu0 0
      %424 = vmatpush1.bf16.msra.mxu0 0
      %425 = vmatprep.subr.bf16.mxu0 0
      %426 = vmatpush1.bf16.msra.mxu0 %v409
      %427 = vmatprep.subr.bf16.mxu0 0
      %428 = vmatpush1.bf16.msra.mxu0 %v408
      %429 = vmatprep.subr.bf16.mxu0 0
      %430 = vmatpush1.bf16.msra.mxu0 %v407
      %431 = vmatprep.subr.bf16.mxu0 0
      %432 = vmatpush1.bf16.msra.mxu0 %v406
      %433 = vmatprep.subr.bf16.mxu0 0
      %434 = vmatpush2.bf16.msra.mxu0 0
      %435 = vmatprep.subr.bf16.mxu0 0
      %436 = vmatpush2.bf16.msra.mxu0 0
      %437 = vmatprep.subr.bf16.mxu0 0
      %438 = vmatpush2.bf16.msra.mxu0 0
      %439 = vmatprep.subr.bf16.mxu0 0
      %440 = vmatpush2.bf16.msra.mxu0 0
      %441 = vmatprep.subr.bf16.mxu0 0
      %442 = vmatpush2.bf16.msra.mxu0 0
      %443 = vmatprep.subr.bf16.mxu0 0
      %444 = vmatpush2.bf16.msra.mxu0 0
      %445 = vmatprep.subr.bf16.mxu0 0
      %446 = vmatpush2.bf16.msra.mxu0 0
      %447 = vmatprep.subr.bf16.mxu0 0
      %448 = vmatpush2.bf16.msra.mxu0 0
      %449 = vmatprep.mubr.bf16.mxu0 0
      %450 = vmatmul.mubr.bf16.gmra.mxu0 %v415
      %v451 = vpop.f32.mrf.mxu0
      %v452 = vadd.f32 0.0, %v451
      %v453 = vpop.f32.mrf.mxu0
      %v454 = vpop.f32.mrf.mxu0
      %v455 = vpop.f32.mrf.mxu0
      %456 = vdwg.mxu0
      %v457 = vadd.f32 %v374, %v452
      %v458 = vld [vmem:[%s217 + $0x3] sm:$0x7]
      %v459 = vpack.c.bf16 %v458, %v458
      %s460 = scalar_lea.vmem %s1, 96
      %v461 = vld [vmem:[%s460] sm:$0xf]
      %v462 = vld [vmem:[%s460 + $0x4] sm:$0xf]
      %v463 = vld [vmem:[%s460 + $0x8] sm:$0xf]
      %v464 = vld [vmem:[%s460 + $0xc] sm:$0xf]
      %v465 = vld [vmem:[%s460 + $0x10] sm:$0xf]
      %v466 = vld [vmem:[%s460 + $0x14] sm:$0xf]
      %v467 = vld [vmem:[%s460 + $0x18] sm:$0xf]
      %v468 = vld [vmem:[%s460 + $0x1c] sm:$0xf]
      %v477 = vunpack.c.l.b16 %v461
      %v478 = vunpack.c.l.b16 %v462
      %v479 = vunpack.c.l.b16 %v463
      %v480 = vunpack.c.l.b16 %v464
      %v481 = vunpack.c.l.b16 %v465
      %v482 = vunpack.c.l.b16 %v466
      %v483 = vunpack.c.l.b16 %v467
      %v484 = vunpack.c.l.b16 %v468
      %v485 = vpack.c.b16 %v478, %v477
      %v486 = vpack.c.b16 %v480, %v479
      %v487 = vpack.c.b16 %v482, %v481
      %v488 = vpack.c.b16 %v484, %v483
      %v494 = vsel %vm268, %v459, 0
      %496 = vmatprep.subr.bf16.mxu0 0
      %497 = vmatpush1.bf16.msra.mxu0 0
      %498 = vmatprep.subr.bf16.mxu0 0
      %499 = vmatpush1.bf16.msra.mxu0 0
      %500 = vmatprep.subr.bf16.mxu0 0
      %501 = vmatpush1.bf16.msra.mxu0 0
      %502 = vmatprep.subr.bf16.mxu0 0
      %503 = vmatpush1.bf16.msra.mxu0 0
      %504 = vmatprep.subr.bf16.mxu0 0
      %505 = vmatpush1.bf16.msra.mxu0 %v488
      %506 = vmatprep.subr.bf16.mxu0 0
      %507 = vmatpush1.bf16.msra.mxu0 %v487
      %508 = vmatprep.subr.bf16.mxu0 0
      %509 = vmatpush1.bf16.msra.mxu0 %v486
      %510 = vmatprep.subr.bf16.mxu0 0
      %511 = vmatpush1.bf16.msra.mxu0 %v485
      %512 = vmatprep.subr.bf16.mxu0 0
      %513 = vmatpush2.bf16.msra.mxu0 0
      %514 = vmatprep.subr.bf16.mxu0 0
      %515 = vmatpush2.bf16.msra.mxu0 0
      %516 = vmatprep.subr.bf16.mxu0 0
      %517 = vmatpush2.bf16.msra.mxu0 0
      %518 = vmatprep.subr.bf16.mxu0 0
      %519 = vmatpush2.bf16.msra.mxu0 0
      %520 = vmatprep.subr.bf16.mxu0 0
      %521 = vmatpush2.bf16.msra.mxu0 0
      %522 = vmatprep.subr.bf16.mxu0 0
      %523 = vmatpush2.bf16.msra.mxu0 0
      %524 = vmatprep.subr.bf16.mxu0 0
      %525 = vmatpush2.bf16.msra.mxu0 0
      %526 = vmatprep.subr.bf16.mxu0 0
      %527 = vmatpush2.bf16.msra.mxu0 0
      %528 = vmatprep.mubr.bf16.mxu0 0
      %529 = vmatmul.mubr.bf16.gmra.mxu0 %v494
      %v530 = vpop.f32.mrf.mxu0
      %v531 = vadd.f32 0.0, %v530
      %v532 = vpop.f32.mrf.mxu0
      %v533 = vpop.f32.mrf.mxu0
      %v534 = vpop.f32.mrf.mxu0
      %535 = vdwg.mxu0
      %v536 = vadd.f32 %v457, %v531
      %v537 = vld [vmem:[%s217 + $0x4] sm:$0x7]
      %v538 = vpack.c.bf16 %v537, %v537
      %s539 = scalar_lea.vmem %s1, 128
      %v540 = vld [vmem:[%s539] sm:$0xf]
      %v541 = vld [vmem:[%s539 + $0x4] sm:$0xf]
      %v542 = vld [vmem:[%s539 + $0x8] sm:$0xf]
      %v543 = vld [vmem:[%s539 + $0xc] sm:$0xf]
      %v544 = vld [vmem:[%s539 + $0x10] sm:$0xf]
      %v545 = vld [vmem:[%s539 + $0x14] sm:$0xf]
      %v546 = vld [vmem:[%s539 + $0x18] sm:$0xf]
      %v547 = vld [vmem:[%s539 + $0x1c] sm:$0xf]
      %v556 = vunpack.c.l.b16 %v540
      %v557 = vunpack.c.l.b16 %v541
      %v558 = vunpack.c.l.b16 %v542
      %v559 = vunpack.c.l.b16 %v543
      %v560 = vunpack.c.l.b16 %v544
      %v561 = vunpack.c.l.b16 %v545
      %v562 = vunpack.c.l.b16 %v546
      %v563 = vunpack.c.l.b16 %v547
      %v564 = vpack.c.b16 %v557, %v556
      %v565 = vpack.c.b16 %v559, %v558
      %v566 = vpack.c.b16 %v561, %v560
      %v567 = vpack.c.b16 %v563, %v562
      %v573 = vsel %vm268, %v538, 0
      %575 = vmatprep.subr.bf16.mxu0 0
      %576 = vmatpush1.bf16.msra.mxu0 0
      %577 = vmatprep.subr.bf16.mxu0 0
      %578 = vmatpush1.bf16.msra.mxu0 0
      %579 = vmatprep.subr.bf16.mxu0 0
      %580 = vmatpush1.bf16.msra.mxu0 0
      %581 = vmatprep.subr.bf16.mxu0 0
      %582 = vmatpush1.bf16.msra.mxu0 0
      %583 = vmatprep.subr.bf16.mxu0 0
      %584 = vmatpush1.bf16.msra.mxu0 %v567
      %585 = vmatprep.subr.bf16.mxu0 0
      %586 = vmatpush1.bf16.msra.mxu0 %v566
      %587 = vmatprep.subr.bf16.mxu0 0
      %588 = vmatpush1.bf16.msra.mxu0 %v565
      %589 = vmatprep.subr.bf16.mxu0 0
      %590 = vmatpush1.bf16.msra.mxu0 %v564
      %591 = vmatprep.subr.bf16.mxu0 0
      %592 = vmatpush2.bf16.msra.mxu0 0
      %593 = vmatprep.subr.bf16.mxu0 0
      %594 = vmatpush2.bf16.msra.mxu0 0
      %595 = vmatprep.subr.bf16.mxu0 0
      %596 = vmatpush2.bf16.msra.mxu0 0
      %597 = vmatprep.subr.bf16.mxu0 0
      %598 = vmatpush2.bf16.msra.mxu0 0
      %599 = vmatprep.subr.bf16.mxu0 0
      %600 = vmatpush2.bf16.msra.mxu0 0
      %601 = vmatprep.subr.bf16.mxu0 0
      %602 = vmatpush2.bf16.msra.mxu0 0
      %603 = vmatprep.subr.bf16.mxu0 0
      %604 = vmatpush2.bf16.msra.mxu0 0
      %605 = vmatprep.subr.bf16.mxu0 0
      %606 = vmatpush2.bf16.msra.mxu0 0
      %607 = vmatprep.mubr.bf16.mxu0 0
      %608 = vmatmul.mubr.bf16.gmra.mxu0 %v573
      %v609 = vpop.f32.mrf.mxu0
      %v610 = vadd.f32 0.0, %v609
      %v611 = vpop.f32.mrf.mxu0
      %v612 = vpop.f32.mrf.mxu0
      %v613 = vpop.f32.mrf.mxu0
      %614 = vdwg.mxu0
      %v615 = vadd.f32 %v536, %v610
      %v616 = vld [vmem:[%s2] sm:$0x1]
      %v618 = vlaneseq
      %v619 = vshrl.u32 %v618, 7
      %v620 = vsub.s32 0, %v619
      %v621 = vrot.slane %v616, %v620
      %v623 = vadd.f32 %v615, %v621
      %vm624 = vcmp.gt.f32.partialorder %v623, 0.0
      %v625 = vmul.f32 %v623, 0.01
      %v626 = vsel %vm624, %v623, %v625
      %vm627 = vcmask 516096
      %628 = vst.msk [vmem:[#allocation2] sm:$0x1] %vm627, 0.0
      %629 = vst.msk [vmem:[#allocation2 + $0x4] sm:$0x1] %vm627, 0.0
      %vm630 = vcmask 518144
      %631 = vst.msk [vmem:[#allocation2 + $0x1] sm:$0x7] %vm630, %v626
      %v632 = vld [vmem:[#allocation2] sm:$0x7]
      %v633 = vld [vmem:[%s3] sm:$0xff]
      %v634 = vld [vmem:[%s3 + $0x8] sm:$0xff]
      %v635 = vld [vmem:[%s3 + $0x10] sm:$0xff]
      %v636 = vld [vmem:[%s3 + $0x18] sm:$0xff]
      %v637 = vld [vmem:[%s3 + $0x20] sm:$0xff]
      %v638 = vld [vmem:[%s3 + $0x28] sm:$0xff]
      %v639 = vld [vmem:[%s3 + $0x30] sm:$0xff]
      %v640 = vld [vmem:[%s3 + $0x38] sm:$0xff]
      %v641 = vld [vmem:[#allocation2 + $0x1] sm:$0x7]
      %s642 = scalar_lea.vmem %s3, 64
      %v643 = vld [vmem:[%s642] sm:$0xff]
      %v644 = vld [vmem:[%s642 + $0x8] sm:$0xff]
      %v645 = vld [vmem:[%s642 + $0x10] sm:$0xff]
      %v646 = vld [vmem:[%s642 + $0x18] sm:$0xff]
      %v647 = vld [vmem:[%s642 + $0x20] sm:$0xff]
      %v648 = vld [vmem:[%s642 + $0x28] sm:$0xff]
      %v649 = vld [vmem:[%s642 + $0x30] sm:$0xff]
      %v650 = vld [vmem:[%s642 + $0x38] sm:$0xff]
      %v652 = vsel %vm268, %v641, 0
      %654 = vmatprep.subr.mxu0 0.0
      %655 = vmatpush1.msra.mxu0 0.0
      %656 = vmatprep.subr.mxu0 0.0
      %657 = vmatpush1.msra.mxu0 0.0
      %658 = vmatprep.subr.mxu0 0.0
      %659 = vmatpush1.msra.mxu0 0.0
      %660 = vmatprep.subr.mxu0 0.0
      %661 = vmatpush1.msra.mxu0 0.0
      %662 = vmatprep.subr.mxu0 0.0
      %663 = vmatpush1.msra.mxu0 0.0
      %664 = vmatprep.subr.mxu0 0.0
      %665 = vmatpush1.msra.mxu0 0.0
      %666 = vmatprep.subr.mxu0 0.0
      %667 = vmatpush1.msra.mxu0 0.0
      %668 = vmatprep.subr.mxu0 0.0
      %669 = vmatpush1.msra.mxu0 0.0
      %670 = vmatprep.subr.mxu0 0.0
      %671 = vmatpush1.msra.mxu0 %v650
      %672 = vmatprep.subr.mxu0 0.0
      %673 = vmatpush1.msra.mxu0 %v649
      %674 = vmatprep.subr.mxu0 0.0
      %675 = vmatpush1.msra.mxu0 %v648
      %676 = vmatprep.subr.mxu0 0.0
      %677 = vmatpush1.msra.mxu0 %v647
      %678 = vmatprep.subr.mxu0 0.0
      %679 = vmatpush1.msra.mxu0 %v646
      %680 = vmatprep.subr.mxu0 0.0
      %681 = vmatpush1.msra.mxu0 %v645
      %682 = vmatprep.subr.mxu0 0.0
      %683 = vmatpush1.msra.mxu0 %v644
      %684 = vmatprep.subr.mxu0 0.0
      %685 = vmatpush1.msra.mxu0 %v643
      %686 = vmatprep.subr.mxu0 0.0
      %687 = vmatpush2.msra.mxu0 0.0
      %688 = vmatprep.subr.mxu0 0.0
      %689 = vmatpush2.msra.mxu0 0.0
      %690 = vmatprep.subr.mxu0 0.0
      %691 = vmatpush2.msra.mxu0 0.0
      %692 = vmatprep.subr.mxu0 0.0
      %693 = vmatpush2.msra.mxu0 0.0
      %694 = vmatprep.subr.mxu0 0.0
      %695 = vmatpush2.msra.mxu0 0.0
      %696 = vmatprep.subr.mxu0 0.0
      %697 = vmatpush2.msra.mxu0 0.0
      %698 = vmatprep.subr.mxu0 0.0
      %699 = vmatpush2.msra.mxu0 0.0
      %700 = vmatprep.subr.mxu0 0.0
      %701 = vmatpush2.msra.mxu0 0.0
      %702 = vmatprep.subr.mxu0 0.0
      %703 = vmatpush2.msra.mxu0 0.0
      %704 = vmatprep.subr.mxu0 0.0
      %705 = vmatpush2.msra.mxu0 0.0
      %706 = vmatprep.subr.mxu0 0.0
      %707 = vmatpush2.msra.mxu0 0.0
      %708 = vmatprep.subr.mxu0 0.0
      %709 = vmatpush2.msra.mxu0 0.0
      %710 = vmatprep.subr.mxu0 0.0
      %711 = vmatpush2.msra.mxu0 0.0
      %712 = vmatprep.subr.mxu0 0.0
      %713 = vmatpush2.msra.mxu0 0.0
      %714 = vmatprep.subr.mxu0 0.0
      %715 = vmatpush2.msra.mxu0 0.0
      %716 = vmatprep.subr.mxu0 0.0
      %717 = vmatpush2.msra.mxu0 0.0
      %718 = vmatprep.mubr.f32.mxu0 0.0
      %719 = vmatmul.mubr.f32.gmra.mxu0 %v652
      %v720 = vpop.f32.mrf.mxu0
      %v721 = vadd.f32 0.0, %v720
      %v722 = vpop.f32.mrf.mxu0
      %723 = vdwg.mxu0
      %v725 = vsel %vm268, %v632, 0
      %727 = vmatprep.subr.mxu0 0.0
      %728 = vmatpush1.msra.mxu0 0.0
      %729 = vmatprep.subr.mxu0 0.0
      %730 = vmatpush1.msra.mxu0 0.0
      %731 = vmatprep.subr.mxu0 0.0
      %732 = vmatpush1.msra.mxu0 0.0
      %733 = vmatprep.subr.mxu0 0.0
      %734 = vmatpush1.msra.mxu0 0.0
      %735 = vmatprep.subr.mxu0 0.0
      %736 = vmatpush1.msra.mxu0 0.0
      %737 = vmatprep.subr.mxu0 0.0
      %738 = vmatpush1.msra.mxu0 0.0
      %739 = vmatprep.subr.mxu0 0.0
      %740 = vmatpush1.msra.mxu0 0.0
      %741 = vmatprep.subr.mxu0 0.0
      %742 = vmatpush1.msra.mxu0 0.0
      %743 = vmatprep.subr.mxu0 0.0
      %744 = vmatpush1.msra.mxu0 %v640
      %745 = vmatprep.subr.mxu0 0.0
      %746 = vmatpush1.msra.mxu0 %v639
      %747 = vmatprep.subr.mxu0 0.0
      %748 = vmatpush1.msra.mxu0 %v638
      %749 = vmatprep.subr.mxu0 0.0
      %750 = vmatpush1.msra.mxu0 %v637
      %751 = vmatprep.subr.mxu0 0.0
      %752 = vmatpush1.msra.mxu0 %v636
      %753 = vmatprep.subr.mxu0 0.0
      %754 = vmatpush1.msra.mxu0 %v635
      %755 = vmatprep.subr.mxu0 0.0
      %756 = vmatpush1.msra.mxu0 %v634
      %757 = vmatprep.subr.mxu0 0.0
      %758 = vmatpush1.msra.mxu0 %v633
      %759 = vmatprep.subr.mxu0 0.0
      %760 = vmatpush2.msra.mxu0 0.0
      %761 = vmatprep.subr.mxu0 0.0
      %762 = vmatpush2.msra.mxu0 0.0
      %763 = vmatprep.subr.mxu0 0.0
      %764 = vmatpush2.msra.mxu0 0.0
      %765 = vmatprep.subr.mxu0 0.0
      %766 = vmatpush2.msra.mxu0 0.0
      %767 = vmatprep.subr.mxu0 0.0
      %768 = vmatpush2.msra.mxu0 0.0
      %769 = vmatprep.subr.mxu0 0.0
      %770 = vmatpush2.msra.mxu0 0.0
      %771 = vmatprep.subr.mxu0 0.0
      %772 = vmatpush2.msra.mxu0 0.0
      %773 = vmatprep.subr.mxu0 0.0
      %774 = vmatpush2.msra.mxu0 0.0
      %775 = vmatprep.subr.mxu0 0.0
      %776 = vmatpush2.msra.mxu0 0.0
      %777 = vmatprep.subr.mxu0 0.0
      %778 = vmatpush2.msra.mxu0 0.0
      %779 = vmatprep.subr.mxu0 0.0
      %780 = vmatpush2.msra.mxu0 0.0
      %781 = vmatprep.subr.mxu0 0.0
      %782 = vmatpush2.msra.mxu0 0.0
      %783 = vmatprep.subr.mxu0 0.0
      %784 = vmatpush2.msra.mxu0 0.0
      %785 = vmatprep.subr.mxu0 0.0
      %786 = vmatpush2.msra.mxu0 0.0
      %787 = vmatprep.subr.mxu0 0.0
      %788 = vmatpush2.msra.mxu0 0.0
      %789 = vmatprep.subr.mxu0 0.0
      %790 = vmatpush2.msra.mxu0 0.0
      %791 = vmatprep.mubr.f32.mxu0 0.0
      %792 = vmatmul.mubr.f32.gmra.mxu0 %v725
      %v793 = vpop.f32.mrf.mxu0
      %v794 = vadd.f32 %v721, %v793
      %v795 = vpop.f32.mrf.mxu0
      %796 = vdwg.mxu0
      %v797 = vld [vmem:[#allocation2 + $0x2] sm:$0x7]
      %s798 = scalar_lea.vmem %s3, 128
      %v799 = vld [vmem:[%s798] sm:$0xff]
      %v800 = vld [vmem:[%s798 + $0x8] sm:$0xff]
      %v801 = vld [vmem:[%s798 + $0x10] sm:$0xff]
      %v802 = vld [vmem:[%s798 + $0x18] sm:$0xff]
      %v803 = vld [vmem:[%s798 + $0x20] sm:$0xff]
      %v804 = vld [vmem:[%s798 + $0x28] sm:$0xff]
      %v805 = vld [vmem:[%s798 + $0x30] sm:$0xff]
      %v806 = vld [vmem:[%s798 + $0x38] sm:$0xff]
      %v808 = vsel %vm268, %v797, 0
      %810 = vmatprep.subr.mxu0 0.0
      %811 = vmatpush1.msra.mxu0 0.0
      %812 = vmatprep.subr.mxu0 0.0
      %813 = vmatpush1.msra.mxu0 0.0
      %814 = vmatprep.subr.mxu0 0.0
      %815 = vmatpush1.msra.mxu0 0.0
      %816 = vmatprep.subr.mxu0 0.0
      %817 = vmatpush1.msra.mxu0 0.0
      %818 = vmatprep.subr.mxu0 0.0
      %819 = vmatpush1.msra.mxu0 0.0
      %820 = vmatprep.subr.mxu0 0.0
      %821 = vmatpush1.msra.mxu0 0.0
      %822 = vmatprep.subr.mxu0 0.0
      %823 = vmatpush1.msra.mxu0 0.0
      %824 = vmatprep.subr.mxu0 0.0
      %825 = vmatpush1.msra.mxu0 0.0
      %826 = vmatprep.subr.mxu0 0.0
      %827 = vmatpush1.msra.mxu0 %v806
      %828 = vmatprep.subr.mxu0 0.0
      %829 = vmatpush1.msra.mxu0 %v805
      %830 = vmatprep.subr.mxu0 0.0
      %831 = vmatpush1.msra.mxu0 %v804
      %832 = vmatprep.subr.mxu0 0.0
      %833 = vmatpush1.msra.mxu0 %v803
      %834 = vmatprep.subr.mxu0 0.0
      %835 = vmatpush1.msra.mxu0 %v802
      %836 = vmatprep.subr.mxu0 0.0
      %837 = vmatpush1.msra.mxu0 %v801
      %838 = vmatprep.subr.mxu0 0.0
      %839 = vmatpush1.msra.mxu0 %v800
      %840 = vmatprep.subr.mxu0 0.0
      %841 = vmatpush1.msra.mxu0 %v799
      %842 = vmatprep.subr.mxu0 0.0
      %843 = vmatpush2.msra.mxu0 0.0
      %844 = vmatprep.subr.mxu0 0.0
      %845 = vmatpush2.msra.mxu0 0.0
      %846 = vmatprep.subr.mxu0 0.0
      %847 = vmatpush2.msra.mxu0 0.0
      %848 = vmatprep.subr.mxu0 0.0
      %849 = vmatpush2.msra.mxu0 0.0
      %850 = vmatprep.subr.mxu0 0.0
      %851 = vmatpush2.msra.mxu0 0.0
      %852 = vmatprep.subr.mxu0 0.0
      %853 = vmatpush2.msra.mxu0 0.0
      %854 = vmatprep.subr.mxu0 0.0
      %855 = vmatpush2.msra.mxu0 0.0
      %856 = vmatprep.subr.mxu0 0.0
      %857 = vmatpush2.msra.mxu0 0.0
      %858 = vmatprep.subr.mxu0 0.0
      %859 = vmatpush2.msra.mxu0 0.0
      %860 = vmatprep.subr.mxu0 0.0
      %861 = vmatpush2.msra.mxu0 0.0
      %862 = vmatprep.subr.mxu0 0.0
      %863 = vmatpush2.msra.mxu0 0.0
      %864 = vmatprep.subr.mxu0 0.0
      %865 = vmatpush2.msra.mxu0 0.0
      %866 = vmatprep.subr.mxu0 0.0
      %867 = vmatpush2.msra.mxu0 0.0
      %868 = vmatprep.subr.mxu0 0.0
      %869 = vmatpush2.msra.mxu0 0.0
      %870 = vmatprep.subr.mxu0 0.0
      %871 = vmatpush2.msra.mxu0 0.0
      %872 = vmatprep.subr.mxu0 0.0
      %873 = vmatpush2.msra.mxu0 0.0
      %874 = vmatprep.mubr.f32.mxu0 0.0
      %875 = vmatmul.mubr.f32.gmra.mxu0 %v808
      %v876 = vpop.f32.mrf.mxu0
      %v877 = vadd.f32 0.0, %v876
      %v878 = vpop.f32.mrf.mxu0
      %879 = vdwg.mxu0
      %v880 = vadd.f32 %v794, %v877
      %v881 = vld [vmem:[#allocation3] sm:$0x1]
      %v883 = vlaneseq
      %v884 = vshrl.u32 %v883, 7
      %v885 = vsub.s32 0, %v884
      %v886 = vrot.slane %v881, %v885
      %v888 = vadd.f32 %v880, %v886
      %vm889 = vcmask 2048
      %890 = vst.msk [vmem:[%s221] sm:$0x7] %vm889, %v888
      %p891 = scmp.lt.s32.totalorder %s18, 7
      %s892 = scalar_select %p891, %s18, 7
      %s893 = smul.addr %s892, 4
      %s894 = scalar_lea.vmem %s5, %s893
      // Predicated region
      $region41: #{sub_discriminator_mpd_forward.5} parent=39 // pred_check
        %p895 = pneg %p146
      $region42: #{sub_discriminator_mpd_forward.5} parent=39 // pred_check_branch
        %897 = sbr.rel (%p895) target = $region44
      $region43: #{sub_discriminator_mpd_forward.5} parent=39 // pred_region
        _
      $region44: #{sub_discriminator_mpd_forward.5} parent=39 // pred_fallthru
        _
    $region40: #{sub_discriminator_mpd_forward.5} parent=5 // pred_fallthru
      _
    %p898 = scmp.le.s32.totalorder 2, %s13
    // Predicated region
    $region45: #{sub_discriminator_mpd_forward.5} parent=5 // pred_check
      %p899 = pneg %p898
    $region46: #{sub_discriminator_mpd_forward.5} parent=5 // pred_check_branch
      %901 = sbr.rel (%p899) target = $region48
    $region47: #{sub_discriminator_mpd_forward.5} parent=5 // pred_region
      %s902 = ssub.s32 %s13, 2
      // Predicated region
      $region49: #{sub_discriminator_mpd_forward.5} parent=47 // pred_check
        %p903 = pneg %p152
      $region50: #{sub_discriminator_mpd_forward.5} parent=47 // pred_check_branch
        %905 = sbr.rel (%p903) target = $region52
      $region51: #{sub_discriminator_mpd_forward.5} parent=47 // pred_region
        %p906 = scmp.lt.s32.totalorder %s19, 7
        %s907 = scalar_select %p906, %s19, 7
        %s908 = smul.addr %s907, 4
        %s909 = scalar_lea.vmem %s5, %s908
      $region52: #{sub_discriminator_mpd_forward.5} parent=47 // pred_fallthru
        _
    $region48: #{sub_discriminator_mpd_forward.5} parent=5 // pred_fallthru
      _
  $region6: #{sub_discriminator_mpd_forward.5} parent=0 // loop_footer
    %s17 = sadd.s32 1, %s13
  $region7: #{sub_discriminator_mpd_forward.5} parent=0 // loop_footer_branch
    %12 = sbr.rel target = $region3
  $region8: #{sub_discriminator_mpd_forward.5} parent=0 // loop_exit
    _

</llo_original>
